<compile_context>
chip_gen: v5e
topology: v5e:2x2
jax: 0.10.0
libtpu: 0.0.40
codegen_flags: <defaults>
</compile_context>

<pallas_src>
import functools

import jax
import jax.numpy as jnp
from jax import lax
from jax.experimental import pallas as pl
from jax.experimental.pallas import tpu as pltpu


def _gat_kernel(x_ref, adj_ref, w_ref, a1_ref, a2_ref, out_ref, wh_ref, *,
                alpha, nheads, nhid, tq):
    q = pl.program_id(0)

    # Head-fused feature transform Wh_all = x @ [W_0 | W_1 | ... ] -> (N, nheads*nhid).
    # Computed once; scratch persists across the row tiles of the grid.
    @pl.when(q == 0)
    def _():
        wh_ref[...] = jnp.dot(
            x_ref[...].astype(jnp.bfloat16),
            w_ref[...].astype(jnp.bfloat16),
            preferred_element_type=jnp.float32)

    row0 = pl.multiple_of(q * tq, tq)
    adj = adj_ref[...].astype(jnp.float32)                      # (tq, N) 0/1 edge mask

    outs = []
    for h in range(nheads):                                     # static, small unroll
        col = h * nhid
        wh_all_h = wh_ref[:, pl.ds(col, nhid)]                  # (N, nhid)  all key nodes
        wh_q_h = wh_ref[pl.ds(row0, tq), pl.ds(col, nhid)]      # (tq, nhid) query rows
        a1_h = a1_ref[pl.ds(h, 1), :]                           # (1, nhid)
        a2_h = a2_ref[pl.ds(h, 1), :]                           # (1, nhid)

        # e_ij = leakyrelu(Wh_i . a1 + Wh_j . a2); f2 comes out directly as a (1, N)
        # row by contracting on H (no (N,1)->(1,N) transpose).
        f1 = lax.dot_general(wh_q_h, a1_h, (((1,), (1,)), ((), ())),
                             preferred_element_type=jnp.float32)         # (tq, 1)
        f2 = lax.dot_general(a2_h, wh_all_h, (((1,), (1,)), ((), ())),
                             preferred_element_type=jnp.float32)         # (1, N)
        e = f1 + f2                                                       # (tq, N)
        e = jnp.where(e > 0, e, alpha * e)                                # LeakyReLU(alpha)
        e = jnp.where(adj > 0, e, -9e15)                                  # mask non-edges

        # Row softmax; the 1/denom normalization is applied AFTER the attention matmul
        # so the broadcast multiply is (tq, nhid) instead of (tq, N).
        m = jnp.max(e, axis=1, keepdims=True)
        p = jnp.exp(e - m)
        denom = jnp.sum(p, axis=1, keepdims=True)

        hp = jnp.dot(p.astype(jnp.bfloat16), wh_all_h.astype(jnp.bfloat16),
                     preferred_element_type=jnp.float32)                  # (tq, nhid)
        hp = hp * pl.reciprocal(denom, approx=True)

        # ELU (concat=True branch). Clamp before exp so the untaken branch never hits +inf.
        outs.append(jnp.where(hp > 0, hp, jnp.exp(jnp.minimum(hp, 0.0)) - 1.0))

    # Single lane-dense store of the full concat-layout tile (tq, nheads*nhid).
    out_ref[...] = jnp.concatenate(outs, axis=-1).astype(out_ref.dtype)


def gat_forward(x, adj, W, a1, a2, *, alpha, tq=None):
    """x:(N,F), adj:(N,N), W:(nheads,F,H), a1/a2:(nheads,H,1) -> (N, nheads*H)."""
    nheads, nfeat, nhid = W.shape
    N = x.shape[0]
    HH = nheads * nhid
    if tq is None:
        tq = N if N <= 256 else 256
    assert N % tq == 0, "row tile must divide N"

    # Head-fused weight layout: W_all[:, h*nhid:(h+1)*nhid] == W[h].
    W_all = jnp.transpose(W, (1, 0, 2)).reshape(nfeat, HH)
    a1r = a1.reshape(nheads, nhid)
    a2r = a2.reshape(nheads, nhid)
    # Adjacency only feeds a ">0" compare -> int8 (4x less HBM traffic / VMEM residency).
    adj_i8 = (adj > 0).astype(jnp.int8)

    kernel = functools.partial(_gat_kernel, alpha=alpha, nheads=nheads,
                               nhid=nhid, tq=tq)
    return pl.pallas_call(
        kernel,
        out_shape=jax.ShapeDtypeStruct((N, HH), jnp.float32),
        grid_spec=pltpu.PrefetchScalarGridSpec(
            num_scalar_prefetch=0,
            grid=(N // tq,),
            in_specs=[
                pl.BlockSpec((N, nfeat), lambda q: (0, 0)),      # x (full, grid-invariant)
                pl.BlockSpec((tq, N), lambda q: (q, 0)),         # adj row tile (int8)
                pl.BlockSpec((nfeat, HH), lambda q: (0, 0)),     # fused per-head weights
                pl.BlockSpec((nheads, nhid), lambda q: (0, 0)),  # a1 rows
                pl.BlockSpec((nheads, nhid), lambda q: (0, 0)),  # a2 rows
            ],
            out_specs=pl.BlockSpec((tq, HH), lambda q: (q, 0)),  # concat layout, no post-transpose
            scratch_shapes=[pltpu.VMEM((N, HH), jnp.float32)],   # Wh for all nodes, persists
        ),
        compiler_params=pltpu.CompilerParams(
            # The Wh scratch is filled at q==0 and reused by later tiles -> sequential axis.
            dimension_semantics=("arbitrary",),
        ),
    )(x, adj_i8, W_all, a1r, a2r)


def gat_reference(x, adj, W, a1, a2, *, alpha):
    outs = []
    for h in range(W.shape[0]):
        wh = x @ W[h]
        e = wh @ a1[h] + (wh @ a2[h]).T
        e = jnp.where(e > 0, e, alpha * e)
        att = jnp.where(adj > 0, e, -9e15)
        att = jax.nn.softmax(att, axis=1)
        hp = att @ wh
        outs.append(jnp.where(hp > 0, hp, jnp.exp(hp) - 1.0))
    return jnp.concatenate(outs, axis=1)


if __name__ == "__main__":
    # Module hyperparams (GraphAttentionLayer shapes implied by pyGAT):
    nfeat, nhid, nheads = 32, 16, 4
    dropout, alpha = 0.6, 0.2
    N = 64  # number of graph nodes

    key = jax.random.PRNGKey(0)
    kx, kadj, kw, ka = jax.random.split(key, 4)

    x = jax.random.normal(kx, (N, nfeat), dtype=jnp.float32)
    # sparse-ish symmetric adjacency with self loops
    adj = (jax.random.uniform(kadj, (N, N)) < 0.2).astype(jnp.float32)
    adj = jnp.maximum(adj, adj.T)
    adj = jnp.maximum(adj, jnp.eye(N, dtype=jnp.float32))

    # xavier_uniform-like init (gain=1.414), deterministic
    lim_w = 1.414 * (6.0 / (nfeat + nhid)) ** 0.5
    W = jax.random.uniform(kw, (nheads, nfeat, nhid), minval=-lim_w, maxval=lim_w,
                           dtype=jnp.float32)
    lim_a = 1.414 * (6.0 / (2 * nhid + 1)) ** 0.5
    a = jax.random.uniform(ka, (nheads, 2 * nhid, 1), minval=-lim_a, maxval=lim_a,
                           dtype=jnp.float32)
    a1, a2 = a[:, :nhid, :], a[:, nhid:, :]

    out = gat_forward(x, adj, W, a1, a2, alpha=alpha)
    out = jax.block_until_ready(out)

    ref = gat_reference(x, adj, W, a1, a2, alpha=alpha)
    assert out.shape == (N, nheads * nhid)
    # bf16 MXU operands (f32 accumulation) + approx reciprocal -> looser tolerance than
    # the pure-f32 reference (semantics check, not bit-exactness).
    max_err = float(jnp.max(jnp.abs(out - ref)))
    assert jnp.allclose(out, ref, atol=1e-1, rtol=5e-2), (
        f"mismatch vs reference; max abs err = {max_err}")

    print("KERNEL_OK")
</pallas_src>

<mosaic_0001>
module attributes {stable_mosaic.version = 11 : i64} {
  func.func @_gat_kernel(%arg0: i32, %arg1: memref<64x32xf32, #tpu.memory_space<vmem>>, %arg2: memref<64x64xi8, #tpu.memory_space<vmem>>, %arg3: memref<32x64xf32, #tpu.memory_space<vmem>>, %arg4: memref<4x16xf32, #tpu.memory_space<vmem>>, %arg5: memref<4x16xf32, #tpu.memory_space<vmem>>, %arg6: memref<64x64xf32, #tpu.memory_space<vmem>>, %arg7: memref<64x64xf32, #tpu.memory_space<vmem>>) attributes {dimension_semantics = [#tpu.dimension_semantics<arbitrary>], iteration_bounds = array<i64: 1>, scalar_prefetch = 0 : i64, scratch_operands = 1 : i64, tpu.core_type = #tpu.core_type<tc>, window_params = [{pipeline_mode = #tpu.pipeline_mode<synchronous>, transform_indices = @transform_0, window_bounds = array<i64: 64, 32>}, {transform_indices = @transform_1, window_bounds = array<i64: 64, 64>}, {pipeline_mode = #tpu.pipeline_mode<synchronous>, transform_indices = @transform_2, window_bounds = array<i64: 32, 64>}, {pipeline_mode = #tpu.pipeline_mode<synchronous>, transform_indices = @transform_3, window_bounds = array<i64: 4, 16>}, {pipeline_mode = #tpu.pipeline_mode<synchronous>, transform_indices = @transform_4, window_bounds = array<i64: 4, 16>}, {transform_indices = @transform_5, window_bounds = array<i64: 64, 64>}]} {
    %c0_i32 = arith.constant 0 : i32
    %0 = arith.cmpi eq, %arg0, %c0_i32 : i32
    %1 = arith.extui %0 : i1 to i32
    %c0_i32_0 = arith.constant 0 : i32
    %2 = arith.cmpi ne, %1, %c0_i32_0 : i32
    scf.if %2 {
      %c0_73 = arith.constant 0 : index
      %c0_74 = arith.constant 0 : index
      %169 = vector.load %arg1[%c0_73, %c0_74] : memref<64x32xf32, #tpu.memory_space<vmem>>, vector<64x32xf32>
      %170 = arith.truncf %169 : vector<64x32xf32> to vector<64x32xbf16>
      %c0_75 = arith.constant 0 : index
      %c0_76 = arith.constant 0 : index
      %171 = vector.load %arg3[%c0_75, %c0_76] : memref<32x64xf32, #tpu.memory_space<vmem>>, vector<32x64xf32>
      %172 = arith.truncf %171 : vector<32x64xf32> to vector<32x64xbf16>
      %cst_77 = arith.constant dense<0.000000e+00> : vector<64x64xf32>
      %173 = tpu.matmul %170, %172, %cst_77 {dimension_numbers = #tpu.dot_dimension_numbers<[1], [0], [0], [1], [0, 0, 1, 1], [], []>} : vector<64x32xbf16>, vector<32x64xbf16>, vector<64x64xf32> -> vector<64x64xf32>
      %c0_78 = arith.constant 0 : index
      %c0_79 = arith.constant 0 : index
      %174 = vector.load %arg7[%c0_78, %c0_79] : memref<64x64xf32, #tpu.memory_space<vmem>>, vector<64x64xf32>
      tpu.vector_store %arg7[%c0_78, %c0_79], %173 {strides = array<i32>} : memref<64x64xf32, #tpu.memory_space<vmem>>, vector<64x64xf32>,
    } else {
    }
    %c64_i32 = arith.constant 64 : i32
    %3 = arith.muli %arg0, %c64_i32 : i32
    %4 = tpu.assume_multiple %3, 64 : i32
    %c0 = arith.constant 0 : index
    %c0_1 = arith.constant 0 : index
    %5 = vector.load %arg2[%c0, %c0_1] : memref<64x64xi8, #tpu.memory_space<vmem>>, vector<64x64xi8>
    %6 = arith.sitofp %5 : vector<64x64xi8> to vector<64x64xf32>
    %c0_2 = arith.constant 0 : index
    %c0_3 = arith.constant 0 : index
    %7 = vector.load %arg7[%c0_2, %c0_3] : memref<64x64xf32, #tpu.memory_space<vmem>>, vector<64x16xf32>
    %8 = arith.index_cast %4 : i32 to index
    %c0_4 = arith.constant 0 : index
    %9 = vector.load %arg7[%8, %c0_4] : memref<64x64xf32, #tpu.memory_space<vmem>>, vector<64x16xf32>
    %c0_5 = arith.constant 0 : index
    %c0_6 = arith.constant 0 : index
    %10 = vector.load %arg4[%c0_5, %c0_6] : memref<4x16xf32, #tpu.memory_space<vmem>>, vector<1x16xf32>
    %c0_7 = arith.constant 0 : index
    %c0_8 = arith.constant 0 : index
    %11 = vector.load %arg5[%c0_7, %c0_8] : memref<4x16xf32, #tpu.memory_space<vmem>>, vector<1x16xf32>
    %cst = arith.constant dense<0.000000e+00> : vector<64x1xf32>
    %12 = tpu.matmul %9, %10, %cst {dimension_numbers = #tpu.dot_dimension_numbers<[1], [1], [0], [0], [0, 0, 1, 0], [], []>} : vector<64x16xf32>, vector<1x16xf32>, vector<64x1xf32> -> vector<64x1xf32>
    %cst_9 = arith.constant dense<0.000000e+00> : vector<1x64xf32>
    %13 = tpu.matmul %11, %7, %cst_9 {dimension_numbers = #tpu.dot_dimension_numbers<[1], [1], [0], [0], [0, 0, 1, 0], [], []>} : vector<1x16xf32>, vector<64x16xf32>, vector<1x64xf32> -> vector<1x64xf32>
    %14 = vector.broadcast %12 : vector<64x1xf32> to vector<64x64xf32>
    %15 = vector.broadcast %13 : vector<1x64xf32> to vector<64x64xf32>
    %16 = arith.addf %14, %15 : vector<64x64xf32>
    %cst_10 = arith.constant 0.000000e+00 : f32
    %17 = vector.broadcast %cst_10 : f32 to vector<64x64xf32>
    %18 = arith.cmpf ogt, %16, %17 : vector<64x64xf32>
    %cst_11 = arith.constant 2.000000e-01 : f32
    %19 = vector.broadcast %cst_11 : f32 to vector<64x64xf32>
    %20 = arith.mulf %19, %16 : vector<64x64xf32>
    %21 = arith.select %18, %16, %20 : vector<64x64xi1>, vector<64x64xf32>
    %cst_12 = arith.constant 0.000000e+00 : f32
    %22 = vector.broadcast %cst_12 : f32 to vector<64x64xf32>
    %23 = arith.cmpf ogt, %6, %22 : vector<64x64xf32>
    %cst_13 = arith.constant -9.000000e+15 : f32
    %24 = vector.broadcast %cst_13 : f32 to vector<64x64xf32>
    %25 = arith.select %23, %21, %24 : vector<64x64xi1>, vector<64x64xf32>
    %cst_14 = arith.constant dense<0xFF800000> : vector<64xf32>
    %26 = vector.multi_reduction <maximumf>, %25, %cst_14 [1] : vector<64x64xf32> to vector<64xf32>
    %27 = vector.shape_cast %26 : vector<64xf32> to vector<64x1xf32>
    %28 = vector.broadcast %27 : vector<64x1xf32> to vector<64x64xf32>
    %29 = arith.subf %25, %28 : vector<64x64xf32>
    %30 = math.exp %29 : vector<64x64xf32>
    %cst_15 = arith.constant dense<0.000000e+00> : vector<64xf32>
    %31 = vector.multi_reduction <add>, %30, %cst_15 [1] : vector<64x64xf32> to vector<64xf32>
    %32 = vector.shape_cast %31 : vector<64xf32> to vector<64x1xf32>
    %33 = arith.truncf %30 : vector<64x64xf32> to vector<64x64xbf16>
    %34 = arith.truncf %7 : vector<64x16xf32> to vector<64x16xbf16>
    %cst_16 = arith.constant dense<0.000000e+00> : vector<64x16xf32>
    %35 = tpu.matmul %33, %34, %cst_16 {dimension_numbers = #tpu.dot_dimension_numbers<[1], [0], [0], [1], [0, 0, 1, 1], [], []>} : vector<64x64xbf16>, vector<64x16xbf16>, vector<64x16xf32> -> vector<64x16xf32>
    %36 = tpu.reciprocal %32 {approx = true} : vector<64x1xf32> -> vector<64x1xf32>
    %37 = vector.broadcast %36 : vector<64x1xf32> to vector<64x16xf32>
    %38 = arith.mulf %35, %37 : vector<64x16xf32>
    %cst_17 = arith.constant 0.000000e+00 : f32
    %39 = vector.broadcast %cst_17 : f32 to vector<64x16xf32>
    %40 = arith.cmpf ogt, %38, %39 : vector<64x16xf32>
    %cst_18 = arith.constant 0.000000e+00 : f32
    %41 = vector.broadcast %cst_18 : f32 to vector<64x16xf32>
    %42 = arith.minimumf %38, %41 : vector<64x16xf32>
    %43 = math.exp %42 : vector<64x16xf32>
    %cst_19 = arith.constant 1.000000e+00 : f32
    %44 = vector.broadcast %cst_19 : f32 to vector<64x16xf32>
    %45 = arith.subf %43, %44 : vector<64x16xf32>
    %46 = arith.select %40, %38, %45 : vector<64x16xi1>, vector<64x16xf32>
    %c0_20 = arith.constant 0 : index
    %c16 = arith.constant 16 : index
    %47 = vector.load %arg7[%c0_20, %c16] : memref<64x64xf32, #tpu.memory_space<vmem>>, vector<64x16xf32>
    %48 = arith.index_cast %4 : i32 to index
    %c16_21 = arith.constant 16 : index
    %49 = vector.load %arg7[%48, %c16_21] : memref<64x64xf32, #tpu.memory_space<vmem>>, vector<64x16xf32>
    %c1 = arith.constant 1 : index
    %c0_22 = arith.constant 0 : index
    %50 = vector.load %arg4[%c1, %c0_22] : memref<4x16xf32, #tpu.memory_space<vmem>>, vector<1x16xf32>
    %c1_23 = arith.constant 1 : index
    %c0_24 = arith.constant 0 : index
    %51 = vector.load %arg5[%c1_23, %c0_24] : memref<4x16xf32, #tpu.memory_space<vmem>>, vector<1x16xf32>
    %cst_25 = arith.constant dense<0.000000e+00> : vector<64x1xf32>
    %52 = tpu.matmul %49, %50, %cst_25 {dimension_numbers = #tpu.dot_dimension_numbers<[1], [1], [0], [0], [0, 0, 1, 0], [], []>} : vector<64x16xf32>, vector<1x16xf32>, vector<64x1xf32> -> vector<64x1xf32>
    %cst_26 = arith.constant dense<0.000000e+00> : vector<1x64xf32>
    %53 = tpu.matmul %51, %47, %cst_26 {dimension_numbers = #tpu.dot_dimension_numbers<[1], [1], [0], [0], [0, 0, 1, 0], [], []>} : vector<1x16xf32>, vector<64x16xf32>, vector<1x64xf32> -> vector<1x64xf32>
    %54 = vector.broadcast %52 : vector<64x1xf32> to vector<64x64xf32>
    %55 = vector.broadcast %53 : vector<1x64xf32> to vector<64x64xf32>
    %56 = arith.addf %54, %55 : vector<64x64xf32>
    %cst_27 = arith.constant 0.000000e+00 : f32
    %57 = vector.broadcast %cst_27 : f32 to vector<64x64xf32>
    %58 = arith.cmpf ogt, %56, %57 : vector<64x64xf32>
    %cst_28 = arith.constant 2.000000e-01 : f32
    %59 = vector.broadcast %cst_28 : f32 to vector<64x64xf32>
    %60 = arith.mulf %59, %56 : vector<64x64xf32>
    %61 = arith.select %58, %56, %60 : vector<64x64xi1>, vector<64x64xf32>
    %cst_29 = arith.constant 0.000000e+00 : f32
    %62 = vector.broadcast %cst_29 : f32 to vector<64x64xf32>
    %63 = arith.cmpf ogt, %6, %62 : vector<64x64xf32>
    %cst_30 = arith.constant -9.000000e+15 : f32
    %64 = vector.broadcast %cst_30 : f32 to vector<64x64xf32>
    %65 = arith.select %63, %61, %64 : vector<64x64xi1>, vector<64x64xf32>
    %cst_31 = arith.constant dense<0xFF800000> : vector<64xf32>
    %66 = vector.multi_reduction <maximumf>, %65, %cst_31 [1] : vector<64x64xf32> to vector<64xf32>
    %67 = vector.shape_cast %66 : vector<64xf32> to vector<64x1xf32>
    %68 = vector.broadcast %67 : vector<64x1xf32> to vector<64x64xf32>
    %69 = arith.subf %65, %68 : vector<64x64xf32>
    %70 = math.exp %69 : vector<64x64xf32>
    %cst_32 = arith.constant dense<0.000000e+00> : vector<64xf32>
    %71 = vector.multi_reduction <add>, %70, %cst_32 [1] : vector<64x64xf32> to vector<64xf32>
    %72 = vector.shape_cast %71 : vector<64xf32> to vector<64x1xf32>
    %73 = arith.truncf %70 : vector<64x64xf32> to vector<64x64xbf16>
    %74 = arith.truncf %47 : vector<64x16xf32> to vector<64x16xbf16>
    %cst_33 = arith.constant dense<0.000000e+00> : vector<64x16xf32>
    %75 = tpu.matmul %73, %74, %cst_33 {dimension_numbers = #tpu.dot_dimension_numbers<[1], [0], [0], [1], [0, 0, 1, 1], [], []>} : vector<64x64xbf16>, vector<64x16xbf16>, vector<64x16xf32> -> vector<64x16xf32>
    %76 = tpu.reciprocal %72 {approx = true} : vector<64x1xf32> -> vector<64x1xf32>
    %77 = vector.broadcast %76 : vector<64x1xf32> to vector<64x16xf32>
    %78 = arith.mulf %75, %77 : vector<64x16xf32>
    %cst_34 = arith.constant 0.000000e+00 : f32
    %79 = vector.broadcast %cst_34 : f32 to vector<64x16xf32>
    %80 = arith.cmpf ogt, %78, %79 : vector<64x16xf32>
    %cst_35 = arith.constant 0.000000e+00 : f32
    %81 = vector.broadcast %cst_35 : f32 to vector<64x16xf32>
    %82 = arith.minimumf %78, %81 : vector<64x16xf32>
    %83 = math.exp %82 : vector<64x16xf32>
    %cst_36 = arith.constant 1.000000e+00 : f32
    %84 = vector.broadcast %cst_36 : f32 to vector<64x16xf32>
    %85 = arith.subf %83, %84 : vector<64x16xf32>
    %86 = arith.select %80, %78, %85 : vector<64x16xi1>, vector<64x16xf32>
    %c0_37 = arith.constant 0 : index
    %c32 = arith.constant 32 : index
    %87 = vector.load %arg7[%c0_37, %c32] : memref<64x64xf32, #tpu.memory_space<vmem>>, vector<64x16xf32>
    %88 = arith.index_cast %4 : i32 to index
    %c32_38 = arith.constant 32 : index
    %89 = vector.load %arg7[%88, %c32_38] : memref<64x64xf32, #tpu.memory_space<vmem>>, vector<64x16xf32>
    %c2 = arith.constant 2 : index
    %c0_39 = arith.constant 0 : index
    %90 = vector.load %arg4[%c2, %c0_39] : memref<4x16xf32, #tpu.memory_space<vmem>>, vector<1x16xf32>
    %c2_40 = arith.constant 2 : index
    %c0_41 = arith.constant 0 : index
    %91 = vector.load %arg5[%c2_40, %c0_41] : memref<4x16xf32, #tpu.memory_space<vmem>>, vector<1x16xf32>
    %cst_42 = arith.constant dense<0.000000e+00> : vector<64x1xf32>
    %92 = tpu.matmul %89, %90, %cst_42 {dimension_numbers = #tpu.dot_dimension_numbers<[1], [1], [0], [0], [0, 0, 1, 0], [], []>} : vector<64x16xf32>, vector<1x16xf32>, vector<64x1xf32> -> vector<64x1xf32>
    %cst_43 = arith.constant dense<0.000000e+00> : vector<1x64xf32>
    %93 = tpu.matmul %91, %87, %cst_43 {dimension_numbers = #tpu.dot_dimension_numbers<[1], [1], [0], [0], [0, 0, 1, 0], [], []>} : vector<1x16xf32>, vector<64x16xf32>, vector<1x64xf32> -> vector<1x64xf32>
    %94 = vector.broadcast %92 : vector<64x1xf32> to vector<64x64xf32>
    %95 = vector.broadcast %93 : vector<1x64xf32> to vector<64x64xf32>
    %96 = arith.addf %94, %95 : vector<64x64xf32>
    %cst_44 = arith.constant 0.000000e+00 : f32
    %97 = vector.broadcast %cst_44 : f32 to vector<64x64xf32>
    %98 = arith.cmpf ogt, %96, %97 : vector<64x64xf32>
    %cst_45 = arith.constant 2.000000e-01 : f32
    %99 = vector.broadcast %cst_45 : f32 to vector<64x64xf32>
    %100 = arith.mulf %99, %96 : vector<64x64xf32>
    %101 = arith.select %98, %96, %100 : vector<64x64xi1>, vector<64x64xf32>
    %cst_46 = arith.constant 0.000000e+00 : f32
    %102 = vector.broadcast %cst_46 : f32 to vector<64x64xf32>
    %103 = arith.cmpf ogt, %6, %102 : vector<64x64xf32>
    %cst_47 = arith.constant -9.000000e+15 : f32
    %104 = vector.broadcast %cst_47 : f32 to vector<64x64xf32>
    %105 = arith.select %103, %101, %104 : vector<64x64xi1>, vector<64x64xf32>
    %cst_48 = arith.constant dense<0xFF800000> : vector<64xf32>
    %106 = vector.multi_reduction <maximumf>, %105, %cst_48 [1] : vector<64x64xf32> to vector<64xf32>
    %107 = vector.shape_cast %106 : vector<64xf32> to vector<64x1xf32>
    %108 = vector.broadcast %107 : vector<64x1xf32> to vector<64x64xf32>
    %109 = arith.subf %105, %108 : vector<64x64xf32>
    %110 = math.exp %109 : vector<64x64xf32>
    %cst_49 = arith.constant dense<0.000000e+00> : vector<64xf32>
    %111 = vector.multi_reduction <add>, %110, %cst_49 [1] : vector<64x64xf32> to vector<64xf32>
    %112 = vector.shape_cast %111 : vector<64xf32> to vector<64x1xf32>
    %113 = arith.truncf %110 : vector<64x64xf32> to vector<64x64xbf16>
    %114 = arith.truncf %87 : vector<64x16xf32> to vector<64x16xbf16>
    %cst_50 = arith.constant dense<0.000000e+00> : vector<64x16xf32>
    %115 = tpu.matmul %113, %114, %cst_50 {dimension_numbers = #tpu.dot_dimension_numbers<[1], [0], [0], [1], [0, 0, 1, 1], [], []>} : vector<64x64xbf16>, vector<64x16xbf16>, vector<64x16xf32> -> vector<64x16xf32>
    %116 = tpu.reciprocal %112 {approx = true} : vector<64x1xf32> -> vector<64x1xf32>
    %117 = vector.broadcast %116 : vector<64x1xf32> to vector<64x16xf32>
    %118 = arith.mulf %115, %117 : vector<64x16xf32>
    %cst_51 = arith.constant 0.000000e+00 : f32
    %119 = vector.broadcast %cst_51 : f32 to vector<64x16xf32>
    %120 = arith.cmpf ogt, %118, %119 : vector<64x16xf32>
    %cst_52 = arith.constant 0.000000e+00 : f32
    %121 = vector.broadcast %cst_52 : f32 to vector<64x16xf32>
    %122 = arith.minimumf %118, %121 : vector<64x16xf32>
    %123 = math.exp %122 : vector<64x16xf32>
    %cst_53 = arith.constant 1.000000e+00 : f32
    %124 = vector.broadcast %cst_53 : f32 to vector<64x16xf32>
    %125 = arith.subf %123, %124 : vector<64x16xf32>
    %126 = arith.select %120, %118, %125 : vector<64x16xi1>, vector<64x16xf32>
    %c0_54 = arith.constant 0 : index
    %c48 = arith.constant 48 : index
    %127 = vector.load %arg7[%c0_54, %c48] : memref<64x64xf32, #tpu.memory_space<vmem>>, vector<64x16xf32>
    %128 = arith.index_cast %4 : i32 to index
    %c48_55 = arith.constant 48 : index
    %129 = vector.load %arg7[%128, %c48_55] : memref<64x64xf32, #tpu.memory_space<vmem>>, vector<64x16xf32>
    %c3 = arith.constant 3 : index
    %c0_56 = arith.constant 0 : index
    %130 = vector.load %arg4[%c3, %c0_56] : memref<4x16xf32, #tpu.memory_space<vmem>>, vector<1x16xf32>
    %c3_57 = arith.constant 3 : index
    %c0_58 = arith.constant 0 : index
    %131 = vector.load %arg5[%c3_57, %c0_58] : memref<4x16xf32, #tpu.memory_space<vmem>>, vector<1x16xf32>
    %cst_59 = arith.constant dense<0.000000e+00> : vector<64x1xf32>
    %132 = tpu.matmul %129, %130, %cst_59 {dimension_numbers = #tpu.dot_dimension_numbers<[1], [1], [0], [0], [0, 0, 1, 0], [], []>} : vector<64x16xf32>, vector<1x16xf32>, vector<64x1xf32> -> vector<64x1xf32>
    %cst_60 = arith.constant dense<0.000000e+00> : vector<1x64xf32>
    %133 = tpu.matmul %131, %127, %cst_60 {dimension_numbers = #tpu.dot_dimension_numbers<[1], [1], [0], [0], [0, 0, 1, 0], [], []>} : vector<1x16xf32>, vector<64x16xf32>, vector<1x64xf32> -> vector<1x64xf32>
    %134 = vector.broadcast %132 : vector<64x1xf32> to vector<64x64xf32>
    %135 = vector.broadcast %133 : vector<1x64xf32> to vector<64x64xf32>
    %136 = arith.addf %134, %135 : vector<64x64xf32>
    %cst_61 = arith.constant 0.000000e+00 : f32
    %137 = vector.broadcast %cst_61 : f32 to vector<64x64xf32>
    %138 = arith.cmpf ogt, %136, %137 : vector<64x64xf32>
    %cst_62 = arith.constant 2.000000e-01 : f32
    %139 = vector.broadcast %cst_62 : f32 to vector<64x64xf32>
    %140 = arith.mulf %139, %136 : vector<64x64xf32>
    %141 = arith.select %138, %136, %140 : vector<64x64xi1>, vector<64x64xf32>
    %cst_63 = arith.constant 0.000000e+00 : f32
    %142 = vector.broadcast %cst_63 : f32 to vector<64x64xf32>
    %143 = arith.cmpf ogt, %6, %142 : vector<64x64xf32>
    %cst_64 = arith.constant -9.000000e+15 : f32
    %144 = vector.broadcast %cst_64 : f32 to vector<64x64xf32>
    %145 = arith.select %143, %141, %144 : vector<64x64xi1>, vector<64x64xf32>
    %cst_65 = arith.constant dense<0xFF800000> : vector<64xf32>
    %146 = vector.multi_reduction <maximumf>, %145, %cst_65 [1] : vector<64x64xf32> to vector<64xf32>
    %147 = vector.shape_cast %146 : vector<64xf32> to vector<64x1xf32>
    %148 = vector.broadcast %147 : vector<64x1xf32> to vector<64x64xf32>
    %149 = arith.subf %145, %148 : vector<64x64xf32>
    %150 = math.exp %149 : vector<64x64xf32>
    %cst_66 = arith.constant dense<0.000000e+00> : vector<64xf32>
    %151 = vector.multi_reduction <add>, %150, %cst_66 [1] : vector<64x64xf32> to vector<64xf32>
    %152 = vector.shape_cast %151 : vector<64xf32> to vector<64x1xf32>
    %153 = arith.truncf %150 : vector<64x64xf32> to vector<64x64xbf16>
    %154 = arith.truncf %127 : vector<64x16xf32> to vector<64x16xbf16>
    %cst_67 = arith.constant dense<0.000000e+00> : vector<64x16xf32>
    %155 = tpu.matmul %153, %154, %cst_67 {dimension_numbers = #tpu.dot_dimension_numbers<[1], [0], [0], [1], [0, 0, 1, 1], [], []>} : vector<64x64xbf16>, vector<64x16xbf16>, vector<64x16xf32> -> vector<64x16xf32>
    %156 = tpu.reciprocal %152 {approx = true} : vector<64x1xf32> -> vector<64x1xf32>
    %157 = vector.broadcast %156 : vector<64x1xf32> to vector<64x16xf32>
    %158 = arith.mulf %155, %157 : vector<64x16xf32>
    %cst_68 = arith.constant 0.000000e+00 : f32
    %159 = vector.broadcast %cst_68 : f32 to vector<64x16xf32>
    %160 = arith.cmpf ogt, %158, %159 : vector<64x16xf32>
    %cst_69 = arith.constant 0.000000e+00 : f32
    %161 = vector.broadcast %cst_69 : f32 to vector<64x16xf32>
    %162 = arith.minimumf %158, %161 : vector<64x16xf32>
    %163 = math.exp %162 : vector<64x16xf32>
    %cst_70 = arith.constant 1.000000e+00 : f32
    %164 = vector.broadcast %cst_70 : f32 to vector<64x16xf32>
    %165 = arith.subf %163, %164 : vector<64x16xf32>
    %166 = arith.select %160, %158, %165 : vector<64x16xi1>, vector<64x16xf32>
    %167 = tpu.concatenate %46, %86, %126, %166 in 1 : vector<64x16xf32>, vector<64x16xf32>, vector<64x16xf32>, vector<64x16xf32> -> vector<64x64xf32>
    %c0_71 = arith.constant 0 : index
    %c0_72 = arith.constant 0 : index
    %168 = vector.load %arg6[%c0_71, %c0_72] : memref<64x64xf32, #tpu.memory_space<vmem>>, vector<64x64xf32>
    tpu.vector_store %arg6[%c0_71, %c0_72], %167 {strides = array<i32>} : memref<64x64xf32, #tpu.memory_space<vmem>>, vector<64x64xf32>,
    return
  }
  func.func @transform_0(%arg0: i32) -> (i32, i32) {
    %c0_i32 = arith.constant 0 : i32
    %c0_i32_0 = arith.constant 0 : i32
    %c0_i32_1 = arith.constant 0 : i32
    return %c0_i32, %c0_i32_0 : i32, i32
  }
  func.func @transform_1(%arg0: i32) -> (i32, i32) {
    %c0_i32 = arith.constant 0 : i32
    %c0_i32_0 = arith.constant 0 : i32
    return %arg0, %c0_i32 : i32, i32
  }
  func.func @transform_2(%arg0: i32) -> (i32, i32) {
    %c0_i32 = arith.constant 0 : i32
    %c0_i32_0 = arith.constant 0 : i32
    %c0_i32_1 = arith.constant 0 : i32
    return %c0_i32, %c0_i32_0 : i32, i32
  }
  func.func @transform_3(%arg0: i32) -> (i32, i32) {
    %c0_i32 = arith.constant 0 : i32
    %c0_i32_0 = arith.constant 0 : i32
    %c0_i32_1 = arith.constant 0 : i32
    return %c0_i32, %c0_i32_0 : i32, i32
  }
  func.func @transform_4(%arg0: i32) -> (i32, i32) {
    %c0_i32 = arith.constant 0 : i32
    %c0_i32_0 = arith.constant 0 : i32
    %c0_i32_1 = arith.constant 0 : i32
    return %c0_i32, %c0_i32_0 : i32, i32
  }
  func.func @transform_5(%arg0: i32) -> (i32, i32) {
    %c0_i32 = arith.constant 0 : i32
    %c0_i32_0 = arith.constant 0 : i32
    return %arg0, %c0_i32 : i32, i32
  }
}

</mosaic_0001>

<llo_original>
// kernel: tpu_custom_call.1
$region0: #{tpu_custom_call.1}
  #allocation0 [shape = 'u32[]', space=smem, size = 0x4, offset = 0x4, fixed_abs, tag = 'smem constant byte address 0x4 - core index']
  #allocation1 [shape = 'u32[72,128]{1,0:T(1,128)}', space=vmem, size = 0x9000, scoped, tag = 'internal scratch']
  #allocation2 [shape = 'f32[64,64]{1,0:T(8,128)}', space=vmem, size = 0x8000, scoped, tag = 'scratch operand']
  %s0 = inlined_call_operand.vmem [shape: f32[64,32], index: 0, kind: input, shape index: {}]
  %s1 = inlined_call_operand.vmem [shape: s8[64,64], index: 1, kind: input, shape index: {}]
  %s2 = inlined_call_operand.vmem [shape: f32[32,64], index: 2, kind: input, shape index: {}]
  %s3 = inlined_call_operand.vmem [shape: f32[4,16], index: 3, kind: input, shape index: {}]
  %s4 = inlined_call_operand.vmem [shape: f32[4,16], index: 4, kind: input, shape index: {}]
  %s5 = inlined_call_operand.hbm [shape: f32[64,64], index: 5, kind: output, shape index: {}]
  %s6 = sld [smem:[#allocation0]]
  $region34: #{tpu_custom_call.1} parent=0
    _
  %s8 = ssub.s32 1, %s6
  %s9 = scalar_select 0, %s8, %s6
  $region1: #{tpu_custom_call.1} parent=0
    #allocation3 [shape = 'u8[32768]{0}', space=vmem, size = 0x8000, scoped, tag = 'output window, operand 0, single buffered']
    #allocation4 [shape = 's32[1]{0}', space=sflag, size = 0x4, scoped, tag = 'scoped memory for tpu_custom_call.1']
    %10 = vsyncpa [#allocation4], 0
    // Predicated region
    $region2: #{tpu_custom_call.1} parent=1 // pred_check
      _
    $region3: #{tpu_custom_call.1} parent=1 // pred_check_branch
      %12 = sbr.rel (0) target = $region5
    $region4: #{tpu_custom_call.1} parent=1 // pred_region
      _
    $region5: #{tpu_custom_call.1} parent=1 // pred_fallthru
      _
    // Predicated region
    $region6: #{tpu_custom_call.1} parent=1 // pred_check
      _
    $region7: #{tpu_custom_call.1} parent=1 // pred_check_branch
      %14 = sbr.rel (0) target = $region9
    $region8: #{tpu_custom_call.1} parent=1 // pred_region
      _
    $region9: #{tpu_custom_call.1} parent=1 // pred_fallthru
      _
    // Predicated region
    $region10: #{tpu_custom_call.1} parent=1 // pred_check
      _
    $region11: #{tpu_custom_call.1} parent=1 // pred_check_branch
      %16 = sbr.rel (0) target = $region13
    $region12: #{tpu_custom_call.1} parent=1 // pred_region
      _
    $region13: #{tpu_custom_call.1} parent=1 // pred_fallthru
      _
    // Predicated region
    $region14: #{tpu_custom_call.1} parent=1 // pred_check
      _
    $region15: #{tpu_custom_call.1} parent=1 // pred_check_branch
      %18 = sbr.rel (0) target = $region17
    $region16: #{tpu_custom_call.1} parent=1 // pred_region
      _
    $region17: #{tpu_custom_call.1} parent=1 // pred_fallthru
      _
    // Predicated region
    $region18: #{tpu_custom_call.1} parent=1 // pred_check
      _
    $region19: #{tpu_custom_call.1} parent=1 // pred_check_branch
      %20 = sbr.rel (0) target = $region21
    $region20: #{tpu_custom_call.1} parent=1 // pred_region
      _
    $region21: #{tpu_custom_call.1} parent=1 // pred_fallthru
      _
    %p22 = scmp.eq.s32.totalorder 0, 0
    // Predicated region
    $region22: #{tpu_custom_call.1} parent=1 // pred_check
      %p23 = pneg %p22
    $region23: #{tpu_custom_call.1} parent=1 // pred_check_branch
      %25 = sbr.rel (%p23) target = $region25
    $region24: #{tpu_custom_call.1} parent=1 // pred_region
      %v26 = vld [vmem:[%s0] sm:$0xff]
      %v27 = vld [vmem:[%s0 + $0x8] sm:$0xff]
      %v28 = vld [vmem:[%s0 + $0x10] sm:$0xff]
      %v29 = vld [vmem:[%s0 + $0x18] sm:$0xff]
      %v30 = vld [vmem:[%s0 + $0x20] sm:$0xff]
      %v31 = vld [vmem:[%s0 + $0x28] sm:$0xff]
      %v32 = vld [vmem:[%s0 + $0x30] sm:$0xff]
      %v33 = vld [vmem:[%s0 + $0x38] sm:$0xff]
      %v34 = vpack.c.bf16 %v27, %v26
      %v35 = vpack.c.bf16 %v29, %v28
      %v36 = vpack.c.bf16 %v31, %v30
      %v37 = vpack.c.bf16 %v33, %v32
      %v38 = vld [vmem:[%s2] sm:$0xff]
      %v39 = vld [vmem:[%s2 + $0x8] sm:$0xff]
      %v40 = vld [vmem:[%s2 + $0x10] sm:$0xff]
      %v41 = vld [vmem:[%s2 + $0x18] sm:$0xff]
      %v42 = vpack.c.bf16 %v39, %v38
      %v43 = vpack.c.bf16 %v41, %v40
      %vm44 = vcmask 261120
      %v46 = vsel %vm44, %v34, 0
      %v49 = vsel %vm44, %v35, 0
      %v52 = vsel %vm44, %v36, 0
      %v55 = vsel %vm44, %v37, 0
      %57 = vmatpush.bf16.msra.mxu0 0
      %58 = vmatpush.bf16.msra.mxu0 0
      %59 = vmatpush.bf16.msra.mxu0 0
      %60 = vmatpush.bf16.msra.mxu0 0
      %61 = vmatpush.bf16.msra.mxu0 0
      %62 = vmatpush.bf16.msra.mxu0 0
      %63 = vmatpush.bf16.msra.mxu0 %v43
      %64 = vmatpush.bf16.msra.mxu0 %v42
      %65 = vmatmul.bf16.gmra.mxu0 %v46
      %v66 = vpop.f32.mrf.mxu0
      %v67 = vadd.f32 0.0, %v66
      %v68 = vpop.f32.mrf.mxu0
      %v69 = vadd.f32 0.0, %v68
      %70 = vmatmul.bf16.gmra.mxu0 %v49
      %v71 = vpop.f32.mrf.mxu0
      %v72 = vadd.f32 0.0, %v71
      %v73 = vpop.f32.mrf.mxu0
      %v74 = vadd.f32 0.0, %v73
      %75 = vmatmul.bf16.gmra.mxu0 %v52
      %v76 = vpop.f32.mrf.mxu0
      %v77 = vadd.f32 0.0, %v76
      %v78 = vpop.f32.mrf.mxu0
      %v79 = vadd.f32 0.0, %v78
      %80 = vmatmul.bf16.gmra.mxu0 %v55
      %v81 = vpop.f32.mrf.mxu0
      %v82 = vadd.f32 0.0, %v81
      %v83 = vpop.f32.mrf.mxu0
      %v84 = vadd.f32 0.0, %v83
      %85 = vdwg.mxu0
      %vm86 = vcmask 523264
      %87 = vst.msk [vmem:[#allocation2] sm:$0xff] %vm86, %v67
      %88 = vst.msk [vmem:[#allocation2 + $0x8] sm:$0xff] %vm86, %v69
      %89 = vst.msk [vmem:[#allocation2 + $0x10] sm:$0xff] %vm86, %v72
      %90 = vst.msk [vmem:[#allocation2 + $0x18] sm:$0xff] %vm86, %v74
      %91 = vst.msk [vmem:[#allocation2 + $0x20] sm:$0xff] %vm86, %v77
      %92 = vst.msk [vmem:[#allocation2 + $0x28] sm:$0xff] %vm86, %v79
      %93 = vst.msk [vmem:[#allocation2 + $0x30] sm:$0xff] %vm86, %v82
      %94 = vst.msk [vmem:[#allocation2 + $0x38] sm:$0xff] %vm86, %v84
    $region25: #{tpu_custom_call.1} parent=1 // pred_fallthru
      _
    %s95 = smul.u32 0, 64
    %v96 = vld [vmem:[%s1] sm:$0xff]
    %v97 = vld [vmem:[%s1 + $0x8] sm:$0xff]
    %v98 = vunpack.c.0.s8 %v96
    %v99 = vunpack.c.1.s8 %v96
    %v100 = vunpack.c.2.s8 %v96
    %v101 = vunpack.c.3.s8 %v96
    %v102 = vunpack.c.0.s8 %v97
    %v103 = vunpack.c.1.s8 %v97
    %v104 = vunpack.c.2.s8 %v97
    %v105 = vunpack.c.3.s8 %v97
    %v106 = vcvt.s32.f32 %v98
    %v107 = vcvt.s32.f32 %v99
    %v108 = vcvt.s32.f32 %v100
    %v109 = vcvt.s32.f32 %v101
    %v110 = vcvt.s32.f32 %v102
    %v111 = vcvt.s32.f32 %v103
    %v112 = vcvt.s32.f32 %v104
    %v113 = vcvt.s32.f32 %v105
    %v114 = vld [vmem:[#allocation2] sm:$0xff]
    %v115 = vld [vmem:[#allocation2 + $0x8] sm:$0xff]
    %v116 = vld [vmem:[#allocation2 + $0x10] sm:$0xff]
    %v117 = vld [vmem:[#allocation2 + $0x18] sm:$0xff]
    %v118 = vld [vmem:[#allocation2 + $0x20] sm:$0xff]
    %v119 = vld [vmem:[#allocation2 + $0x28] sm:$0xff]
    %v120 = vld [vmem:[#allocation2 + $0x30] sm:$0xff]
    %v121 = vld [vmem:[#allocation2 + $0x38] sm:$0xff]
    %s122 = scalar_lea.vmem [#allocation2], %s95
    %v123 = vld [vmem:[%s122] sm:$0xff]
    %v124 = vld [vmem:[%s122 + $0x8] sm:$0xff]
    %v125 = vld [vmem:[%s122 + $0x10] sm:$0xff]
    %v126 = vld [vmem:[%s122 + $0x18] sm:$0xff]
    %v127 = vld [vmem:[%s122 + $0x20] sm:$0xff]
    %v128 = vld [vmem:[%s122 + $0x28] sm:$0xff]
    %v129 = vld [vmem:[%s122 + $0x30] sm:$0xff]
    %v130 = vld [vmem:[%s122 + $0x38] sm:$0xff]
    %v131 = vld [vmem:[%s3] sm:$0x1]
    %v132 = vld [vmem:[%s4] sm:$0x1]
    %v133 = vperm.slane %v131, 0
    %v134 = vmul.f32 %v123, %v133
    %v135 = vmul.f32 %v124, %v133
    %v136 = vmul.f32 %v125, %v133
    %v137 = vmul.f32 %v126, %v133
    %v138 = vmul.f32 %v127, %v133
    %v139 = vmul.f32 %v128, %v133
    %v140 = vmul.f32 %v129, %v133
    %v141 = vmul.f32 %v130, %v133
    %vm142 = vcmask 130048
    %v143 = vsel %vm142, %v134, 0.0
    %144 = vadd.xlane.f32.xlu0 %v143
    %v145 = vpop.xlane.xlu0 %144
    %v146 = vsel %vm142, %v135, 0.0
    %147 = vadd.xlane.f32.xlu0 %v146
    %v148 = vpop.xlane.xlu0 %147
    %v149 = vsel %vm142, %v136, 0.0
    %150 = vadd.xlane.f32.xlu0 %v149
    %v151 = vpop.xlane.xlu0 %150
    %v152 = vsel %vm142, %v137, 0.0
    %153 = vadd.xlane.f32.xlu0 %v152
    %v154 = vpop.xlane.xlu0 %153
    %v155 = vsel %vm142, %v138, 0.0
    %156 = vadd.xlane.f32.xlu0 %v155
    %v157 = vpop.xlane.xlu0 %156
    %v158 = vsel %vm142, %v139, 0.0
    %159 = vadd.xlane.f32.xlu0 %v158
    %v160 = vpop.xlane.xlu0 %159
    %v161 = vsel %vm142, %v140, 0.0
    %162 = vadd.xlane.f32.xlu0 %v161
    %v163 = vpop.xlane.xlu0 %162
    %v164 = vsel %vm142, %v141, 0.0
    %165 = vadd.xlane.f32.xlu0 %v164
    %v166 = vpop.xlane.xlu0 %165
    %v168 = vsel %vm142, %v132, 0
    %v171 = vsel %vm142, %v114, 0
    %v174 = vsel %vm142, %v115, 0
    %v177 = vsel %vm142, %v116, 0
    %v180 = vsel %vm142, %v117, 0
    %v183 = vsel %vm142, %v118, 0
    %v186 = vsel %vm142, %v119, 0
    %v189 = vsel %vm142, %v120, 0
    %v192 = vsel %vm142, %v121, 0
    %194 = vmatpush.xpose.msra.mxu0 0.0
    %195 = vmatpush.xpose.msra.mxu0 0.0
    %196 = vmatpush.xpose.msra.mxu0 0.0
    %197 = vmatpush.xpose.msra.mxu0 0.0
    %198 = vmatpush.xpose.msra.mxu0 0.0
    %199 = vmatpush.xpose.msra.mxu0 0.0
    %200 = vmatpush.xpose.msra.mxu0 0.0
    %201 = vmatpush.xpose.msra.mxu0 0.0
    %202 = vmatpush.xpose.msra.mxu0 %v192
    %203 = vmatpush.xpose.msra.mxu0 %v189
    %204 = vmatpush.xpose.msra.mxu0 %v186
    %205 = vmatpush.xpose.msra.mxu0 %v183
    %206 = vmatpush.xpose.msra.mxu0 %v180
    %207 = vmatpush.xpose.msra.mxu0 %v177
    %208 = vmatpush.xpose.msra.mxu0 %v174
    %209 = vmatpush.xpose.msra.mxu0 %v171
    %210 = vmatmul.f32.gmra.mxu0 %v168
    %v211 = vpop.f32.mrf.mxu0
    %v212 = vadd.f32 0.0, %v211
    %213 = vdwg.mxu0
    %v214 = vperm.slane %v212, 0
    %v215 = vadd.f32 %v145, %v214
    %v216 = vadd.f32 %v148, %v214
    %v217 = vadd.f32 %v151, %v214
    %v218 = vadd.f32 %v154, %v214
    %v219 = vadd.f32 %v157, %v214
    %v220 = vadd.f32 %v160, %v214
    %v221 = vadd.f32 %v163, %v214
    %v222 = vadd.f32 %v166, %v214
    %vm223 = vcmp.gt.f32.partialorder %v215, 0.0
    %vm224 = vcmp.gt.f32.partialorder %v216, 0.0
    %vm225 = vcmp.gt.f32.partialorder %v217, 0.0
    %vm226 = vcmp.gt.f32.partialorder %v218, 0.0
    %vm227 = vcmp.gt.f32.partialorder %v219, 0.0
    %vm228 = vcmp.gt.f32.partialorder %v220, 0.0
    %vm229 = vcmp.gt.f32.partialorder %v221, 0.0
    %vm230 = vcmp.gt.f32.partialorder %v222, 0.0
    %v231 = vmul.f32 %v215, 0.2
    %v232 = vmul.f32 %v216, 0.2
    %v233 = vmul.f32 %v217, 0.2
    %v234 = vmul.f32 %v218, 0.2
    %v235 = vmul.f32 %v219, 0.2
    %v236 = vmul.f32 %v220, 0.2
    %v237 = vmul.f32 %v221, 0.2
    %v238 = vmul.f32 %v222, 0.2
    %v239 = vsel %vm223, %v215, %v231
    %v240 = vsel %vm224, %v216, %v232
    %v241 = vsel %vm225, %v217, %v233
    %v242 = vsel %vm226, %v218, %v234
    %v243 = vsel %vm227, %v219, %v235
    %v244 = vsel %vm228, %v220, %v236
    %v245 = vsel %vm229, %v221, %v237
    %v246 = vsel %vm230, %v222, %v238
    %vm247 = vcmp.gt.f32.partialorder %v106, 0.0
    %vm248 = vcmp.gt.f32.partialorder %v107, 0.0
    %vm249 = vcmp.gt.f32.partialorder %v108, 0.0
    %vm250 = vcmp.gt.f32.partialorder %v109, 0.0
    %vm251 = vcmp.gt.f32.partialorder %v110, 0.0
    %vm252 = vcmp.gt.f32.partialorder %v111, 0.0
    %vm253 = vcmp.gt.f32.partialorder %v112, 0.0
    %vm254 = vcmp.gt.f32.partialorder %v113, 0.0
    %v255 = vsel %vm247, %v239, -9e+15
    %v256 = vsel %vm248, %v240, -9e+15
    %v257 = vsel %vm249, %v241, -9e+15
    %v258 = vsel %vm250, %v242, -9e+15
    %v259 = vsel %vm251, %v243, -9e+15
    %v260 = vsel %vm252, %v244, -9e+15
    %v261 = vsel %vm253, %v245, -9e+15
    %v262 = vsel %vm254, %v246, -9e+15
    %vm263 = vcmask 523264
    %v264 = vsel %vm263, %v255, -inf
    %265 = vmax.xlane.f32.xlu0 %v264
    %v266 = vpop.xlane.xlu0 %265
    %v267 = vsel %vm263, %v256, -inf
    %268 = vmax.xlane.f32.xlu0 %v267
    %v269 = vpop.xlane.xlu0 %268
    %v270 = vsel %vm263, %v257, -inf
    %271 = vmax.xlane.f32.xlu0 %v270
    %v272 = vpop.xlane.xlu0 %271
    %v273 = vsel %vm263, %v258, -inf
    %274 = vmax.xlane.f32.xlu0 %v273
    %v275 = vpop.xlane.xlu0 %274
    %v276 = vsel %vm263, %v259, -inf
    %277 = vmax.xlane.f32.xlu0 %v276
    %v278 = vpop.xlane.xlu0 %277
    %v279 = vsel %vm263, %v260, -inf
    %280 = vmax.xlane.f32.xlu0 %v279
    %v281 = vpop.xlane.xlu0 %280
    %v282 = vsel %vm263, %v261, -inf
    %283 = vmax.xlane.f32.xlu0 %v282
    %v284 = vpop.xlane.xlu0 %283
    %v285 = vsel %vm263, %v262, -inf
    %286 = vmax.xlane.f32.xlu0 %v285
    %v287 = vpop.xlane.xlu0 %286
    %v288 = vsub.f32 %v255, %v266
    %v289 = vsub.f32 %v256, %v269
    %v290 = vsub.f32 %v257, %v272
    %v291 = vsub.f32 %v258, %v275
    %v292 = vsub.f32 %v259, %v278
    %v293 = vsub.f32 %v260, %v281
    %v294 = vsub.f32 %v261, %v284
    %v295 = vsub.f32 %v262, %v287
    %v296 = vmul.f32 %v288, 1.442695
    %v297 = vpow.pop %v296
    %v298 = vmul.f32 %v289, 1.442695
    %v299 = vpow.pop %v298
    %v300 = vmul.f32 %v290, 1.442695
    %v301 = vpow.pop %v300
    %v302 = vmul.f32 %v291, 1.442695
    %v303 = vpow.pop %v302
    %v304 = vmul.f32 %v292, 1.442695
    %v305 = vpow.pop %v304
    %v306 = vmul.f32 %v293, 1.442695
    %v307 = vpow.pop %v306
    %v308 = vmul.f32 %v294, 1.442695
    %v309 = vpow.pop %v308
    %v310 = vmul.f32 %v295, 1.442695
    %v311 = vpow.pop %v310
    %v312 = vsel %vm263, %v297, 0.0
    %313 = vadd.xlane.f32.xlu0 %v312
    %v314 = vpop.xlane.xlu0 %313
    %v315 = vsel %vm263, %v299, 0.0
    %316 = vadd.xlane.f32.xlu0 %v315
    %v317 = vpop.xlane.xlu0 %316
    %v318 = vsel %vm263, %v301, 0.0
    %319 = vadd.xlane.f32.xlu0 %v318
    %v320 = vpop.xlane.xlu0 %319
    %v321 = vsel %vm263, %v303, 0.0
    %322 = vadd.xlane.f32.xlu0 %v321
    %v323 = vpop.xlane.xlu0 %322
    %v324 = vsel %vm263, %v305, 0.0
    %325 = vadd.xlane.f32.xlu0 %v324
    %v326 = vpop.xlane.xlu0 %325
    %v327 = vsel %vm263, %v307, 0.0
    %328 = vadd.xlane.f32.xlu0 %v327
    %v329 = vpop.xlane.xlu0 %328
    %v330 = vsel %vm263, %v309, 0.0
    %331 = vadd.xlane.f32.xlu0 %v330
    %v332 = vpop.xlane.xlu0 %331
    %v333 = vsel %vm263, %v311, 0.0
    %334 = vadd.xlane.f32.xlu0 %v333
    %v335 = vpop.xlane.xlu0 %334
    %v336 = vpack.c.bf16 %v299, %v297
    %v337 = vpack.c.bf16 %v303, %v301
    %v338 = vpack.c.bf16 %v307, %v305
    %v339 = vpack.c.bf16 %v311, %v309
    %v340 = vpack.c.bf16 %v115, %v114
    %v341 = vpack.c.bf16 %v117, %v116
    %v342 = vpack.c.bf16 %v119, %v118
    %v343 = vpack.c.bf16 %v121, %v120
    %v345 = vsel %vm263, %v336, 0
    %v348 = vsel %vm263, %v337, 0
    %v351 = vsel %vm263, %v338, 0
    %v354 = vsel %vm263, %v339, 0
    %356 = vmatpush.bf16.msra.mxu0 0
    %357 = vmatpush.bf16.msra.mxu0 0
    %358 = vmatpush.bf16.msra.mxu0 0
    %359 = vmatpush.bf16.msra.mxu0 0
    %360 = vmatpush.bf16.msra.mxu0 %v343
    %361 = vmatpush.bf16.msra.mxu0 %v342
    %362 = vmatpush.bf16.msra.mxu0 %v341
    %363 = vmatpush.bf16.msra.mxu0 %v340
    %364 = vmatmul.bf16.gmra.mxu0 %v345
    %v365 = vpop.f32.mrf.mxu0
    %v366 = vadd.f32 0.0, %v365
    %v367 = vpop.f32.mrf.mxu0
    %v368 = vadd.f32 0.0, %v367
    %369 = vmatmul.bf16.gmra.mxu0 %v348
    %v370 = vpop.f32.mrf.mxu0
    %v371 = vadd.f32 0.0, %v370
    %v372 = vpop.f32.mrf.mxu0
    %v373 = vadd.f32 0.0, %v372
    %374 = vmatmul.bf16.gmra.mxu0 %v351
    %v375 = vpop.f32.mrf.mxu0
    %v376 = vadd.f32 0.0, %v375
    %v377 = vpop.f32.mrf.mxu0
    %v378 = vadd.f32 0.0, %v377
    %379 = vmatmul.bf16.gmra.mxu0 %v354
    %v380 = vpop.f32.mrf.mxu0
    %v381 = vadd.f32 0.0, %v380
    %v382 = vpop.f32.mrf.mxu0
    %v383 = vadd.f32 0.0, %v382
    %384 = vdwg.mxu0
    %v385 = vrcp.pop %v314
    %v386 = vrcp.pop %v317
    %v387 = vrcp.pop %v320
    %v388 = vrcp.pop %v323
    %v389 = vrcp.pop %v326
    %v390 = vrcp.pop %v329
    %v391 = vrcp.pop %v332
    %v392 = vrcp.pop %v335
    %v393 = vmul.f32 %v366, %v385
    %v394 = vmul.f32 %v368, %v386
    %v395 = vmul.f32 %v371, %v387
    %v396 = vmul.f32 %v373, %v388
    %v397 = vmul.f32 %v376, %v389
    %v398 = vmul.f32 %v378, %v390
    %v399 = vmul.f32 %v381, %v391
    %v400 = vmul.f32 %v383, %v392
    %vm401 = vcmp.gt.f32.partialorder %v393, 0.0
    %vm402 = vcmp.gt.f32.partialorder %v394, 0.0
    %vm403 = vcmp.gt.f32.partialorder %v395, 0.0
    %vm404 = vcmp.gt.f32.partialorder %v396, 0.0
    %vm405 = vcmp.gt.f32.partialorder %v397, 0.0
    %vm406 = vcmp.gt.f32.partialorder %v398, 0.0
    %vm407 = vcmp.gt.f32.partialorder %v399, 0.0
    %vm408 = vcmp.gt.f32.partialorder %v400, 0.0
    %v409 = vmin.f32 %v393, 0.0
    %v410 = vmin.f32 %v394, 0.0
    %v411 = vmin.f32 %v395, 0.0
    %v412 = vmin.f32 %v396, 0.0
    %v413 = vmin.f32 %v397, 0.0
    %v414 = vmin.f32 %v398, 0.0
    %v415 = vmin.f32 %v399, 0.0
    %v416 = vmin.f32 %v400, 0.0
    %v417 = vmul.f32 %v409, 1.442695
    %v418 = vpow.pop %v417
    %v419 = vmul.f32 %v410, 1.442695
    %v420 = vpow.pop %v419
    %v421 = vmul.f32 %v411, 1.442695
    %v422 = vpow.pop %v421
    %v423 = vmul.f32 %v412, 1.442695
    %v424 = vpow.pop %v423
    %v425 = vmul.f32 %v413, 1.442695
    %v426 = vpow.pop %v425
    %v427 = vmul.f32 %v414, 1.442695
    %v428 = vpow.pop %v427
    %v429 = vmul.f32 %v415, 1.442695
    %v430 = vpow.pop %v429
    %v431 = vmul.f32 %v416, 1.442695
    %v432 = vpow.pop %v431
    %v433 = vsub.f32 %v418, 1.0
    %v434 = vsub.f32 %v420, 1.0
    %v435 = vsub.f32 %v422, 1.0
    %v436 = vsub.f32 %v424, 1.0
    %v437 = vsub.f32 %v426, 1.0
    %v438 = vsub.f32 %v428, 1.0
    %v439 = vsub.f32 %v430, 1.0
    %v440 = vsub.f32 %v432, 1.0
    %v441 = vsel %vm401, %v393, %v433
    %v442 = vsel %vm402, %v394, %v434
    %v443 = vsel %vm403, %v395, %v435
    %v444 = vsel %vm404, %v396, %v436
    %v445 = vsel %vm405, %v397, %v437
    %v446 = vsel %vm406, %v398, %v438
    %v447 = vsel %vm407, %v399, %v439
    %v448 = vsel %vm408, %v400, %v440
    %v449 = vld [vmem:[%s3 + $0x1] sm:$0x1]
    %v450 = vld [vmem:[%s4 + $0x1] sm:$0x1]
    %v451 = vperm.slane %v449, 0
    %453 = vrot.lane.b32.xlu0 %v451, 16
    %v454 = vpop.permute.xlu0 %453
    %v456 = vmul.f32 %v123, %v454
    %v457 = vmul.f32 %v124, %v454
    %v458 = vmul.f32 %v125, %v454
    %v459 = vmul.f32 %v126, %v454
    %v460 = vmul.f32 %v127, %v454
    %v461 = vmul.f32 %v128, %v454
    %v462 = vmul.f32 %v129, %v454
    %v463 = vmul.f32 %v130, %v454
    %472 = vrot.lane.b32.xlu0 %v456, 112
    %v473 = vpop.permute.xlu0 %472
    %474 = vrot.lane.b32.xlu0 %v457, 112
    %v475 = vpop.permute.xlu0 %474
    %476 = vrot.lane.b32.xlu0 %v458, 112
    %v477 = vpop.permute.xlu0 %476
    %478 = vrot.lane.b32.xlu0 %v459, 112
    %v479 = vpop.permute.xlu0 %478
    %480 = vrot.lane.b32.xlu0 %v460, 112
    %v481 = vpop.permute.xlu0 %480
    %482 = vrot.lane.b32.xlu0 %v461, 112
    %v483 = vpop.permute.xlu0 %482
    %484 = vrot.lane.b32.xlu0 %v462, 112
    %v485 = vpop.permute.xlu0 %484
    %486 = vrot.lane.b32.xlu0 %v463, 112
    %v487 = vpop.permute.xlu0 %486
    %v496 = vsel %vm142, %v473, 0.0
    %497 = vadd.xlane.f32.xlu0 %v496
    %v498 = vpop.xlane.xlu0 %497
    %v499 = vsel %vm142, %v475, 0.0
    %500 = vadd.xlane.f32.xlu0 %v499
    %v501 = vpop.xlane.xlu0 %500
    %v502 = vsel %vm142, %v477, 0.0
    %503 = vadd.xlane.f32.xlu0 %v502
    %v504 = vpop.xlane.xlu0 %503
    %v505 = vsel %vm142, %v479, 0.0
    %506 = vadd.xlane.f32.xlu0 %v505
    %v507 = vpop.xlane.xlu0 %506
    %v508 = vsel %vm142, %v481, 0.0
    %509 = vadd.xlane.f32.xlu0 %v508
    %v510 = vpop.xlane.xlu0 %509
    %v511 = vsel %vm142, %v483, 0.0
    %512 = vadd.xlane.f32.xlu0 %v511
    %v513 = vpop.xlane.xlu0 %512
    %v514 = vsel %vm142, %v485, 0.0
    %515 = vadd.xlane.f32.xlu0 %v514
    %v516 = vpop.xlane.xlu0 %515
    %v517 = vsel %vm142, %v487, 0.0
    %518 = vadd.xlane.f32.xlu0 %v517
    %v519 = vpop.xlane.xlu0 %518
    %520 = vrot.lane.b32.xlu0 %v114, 112
    %v521 = vpop.permute.xlu0 %520
    %522 = vrot.lane.b32.xlu0 %v115, 112
    %v523 = vpop.permute.xlu0 %522
    %524 = vrot.lane.b32.xlu0 %v116, 112
    %v525 = vpop.permute.xlu0 %524
    %526 = vrot.lane.b32.xlu0 %v117, 112
    %v527 = vpop.permute.xlu0 %526
    %528 = vrot.lane.b32.xlu0 %v118, 112
    %v529 = vpop.permute.xlu0 %528
    %530 = vrot.lane.b32.xlu0 %v119, 112
    %v531 = vpop.permute.xlu0 %530
    %532 = vrot.lane.b32.xlu0 %v120, 112
    %v533 = vpop.permute.xlu0 %532
    %534 = vrot.lane.b32.xlu0 %v121, 112
    %v535 = vpop.permute.xlu0 %534
    %v537 = vsel %vm142, %v450, 0
    %v539 = vsel %vm142, %v521, 0
    %v541 = vsel %vm142, %v523, 0
    %v543 = vsel %vm142, %v525, 0
    %v545 = vsel %vm142, %v527, 0
    %v547 = vsel %vm142, %v529, 0
    %v549 = vsel %vm142, %v531, 0
    %v551 = vsel %vm142, %v533, 0
    %v553 = vsel %vm142, %v535, 0
    %555 = vmatpush.xpose.msra.mxu0 0.0
    %556 = vmatpush.xpose.msra.mxu0 0.0
    %557 = vmatpush.xpose.msra.mxu0 0.0
    %558 = vmatpush.xpose.msra.mxu0 0.0
    %559 = vmatpush.xpose.msra.mxu0 0.0
    %560 = vmatpush.xpose.msra.mxu0 0.0
    %561 = vmatpush.xpose.msra.mxu0 0.0
    %562 = vmatpush.xpose.msra.mxu0 0.0
    %563 = vmatpush.xpose.msra.mxu0 %v553
    %564 = vmatpush.xpose.msra.mxu0 %v551
    %565 = vmatpush.xpose.msra.mxu0 %v549
    %566 = vmatpush.xpose.msra.mxu0 %v547
    %567 = vmatpush.xpose.msra.mxu0 %v545
    %568 = vmatpush.xpose.msra.mxu0 %v543
    %569 = vmatpush.xpose.msra.mxu0 %v541
    %570 = vmatpush.xpose.msra.mxu0 %v539
    %571 = vmatmul.f32.gmra.mxu0 %v537
    %v572 = vpop.f32.mrf.mxu0
    %v573 = vadd.f32 0.0, %v572
    %574 = vdwg.mxu0
    %v575 = vperm.slane %v573, 0
    %v576 = vadd.f32 %v498, %v575
    %v577 = vadd.f32 %v501, %v575
    %v578 = vadd.f32 %v504, %v575
    %v579 = vadd.f32 %v507, %v575
    %v580 = vadd.f32 %v510, %v575
    %v581 = vadd.f32 %v513, %v575
    %v582 = vadd.f32 %v516, %v575
    %v583 = vadd.f32 %v519, %v575
    %vm584 = vcmp.gt.f32.partialorder %v576, 0.0
    %vm585 = vcmp.gt.f32.partialorder %v577, 0.0
    %vm586 = vcmp.gt.f32.partialorder %v578, 0.0
    %vm587 = vcmp.gt.f32.partialorder %v579, 0.0
    %vm588 = vcmp.gt.f32.partialorder %v580, 0.0
    %vm589 = vcmp.gt.f32.partialorder %v581, 0.0
    %vm590 = vcmp.gt.f32.partialorder %v582, 0.0
    %vm591 = vcmp.gt.f32.partialorder %v583, 0.0
    %v592 = vmul.f32 %v576, 0.2
    %v593 = vmul.f32 %v577, 0.2
    %v594 = vmul.f32 %v578, 0.2
    %v595 = vmul.f32 %v579, 0.2
    %v596 = vmul.f32 %v580, 0.2
    %v597 = vmul.f32 %v581, 0.2
    %v598 = vmul.f32 %v582, 0.2
    %v599 = vmul.f32 %v583, 0.2
    %v600 = vsel %vm584, %v576, %v592
    %v601 = vsel %vm585, %v577, %v593
    %v602 = vsel %vm586, %v578, %v594
    %v603 = vsel %vm587, %v579, %v595
    %v604 = vsel %vm588, %v580, %v596
    %v605 = vsel %vm589, %v581, %v597
    %v606 = vsel %vm590, %v582, %v598
    %v607 = vsel %vm591, %v583, %v599
    %v608 = vsel %vm247, %v600, -9e+15
    %v609 = vsel %vm248, %v601, -9e+15
    %v610 = vsel %vm249, %v602, -9e+15
    %v611 = vsel %vm250, %v603, -9e+15
    %v612 = vsel %vm251, %v604, -9e+15
    %v613 = vsel %vm252, %v605, -9e+15
    %v614 = vsel %vm253, %v606, -9e+15
    %v615 = vsel %vm254, %v607, -9e+15
    %v616 = vsel %vm263, %v608, -inf
    %617 = vmax.xlane.f32.xlu0 %v616
    %v618 = vpop.xlane.xlu0 %617
    %v619 = vsel %vm263, %v609, -inf
    %620 = vmax.xlane.f32.xlu0 %v619
    %v621 = vpop.xlane.xlu0 %620
    %v622 = vsel %vm263, %v610, -inf
    %623 = vmax.xlane.f32.xlu0 %v622
    %v624 = vpop.xlane.xlu0 %623
    %v625 = vsel %vm263, %v611, -inf
    %626 = vmax.xlane.f32.xlu0 %v625
    %v627 = vpop.xlane.xlu0 %626
    %v628 = vsel %vm263, %v612, -inf
    %629 = vmax.xlane.f32.xlu0 %v628
    %v630 = vpop.xlane.xlu0 %629
    %v631 = vsel %vm263, %v613, -inf
    %632 = vmax.xlane.f32.xlu0 %v631
    %v633 = vpop.xlane.xlu0 %632
    %v634 = vsel %vm263, %v614, -inf
    %635 = vmax.xlane.f32.xlu0 %v634
    %v636 = vpop.xlane.xlu0 %635
    %v637 = vsel %vm263, %v615, -inf
    %638 = vmax.xlane.f32.xlu0 %v637
    %v639 = vpop.xlane.xlu0 %638
    %v640 = vsub.f32 %v608, %v618
    %v641 = vsub.f32 %v609, %v621
    %v642 = vsub.f32 %v610, %v624
    %v643 = vsub.f32 %v611, %v627
    %v644 = vsub.f32 %v612, %v630
    %v645 = vsub.f32 %v613, %v633
    %v646 = vsub.f32 %v614, %v636
    %v647 = vsub.f32 %v615, %v639
    %v648 = vmul.f32 %v640, 1.442695
    %v649 = vpow.pop %v648
    %v650 = vmul.f32 %v641, 1.442695
    %v651 = vpow.pop %v650
    %v652 = vmul.f32 %v642, 1.442695
    %v653 = vpow.pop %v652
    %v654 = vmul.f32 %v643, 1.442695
    %v655 = vpow.pop %v654
    %v656 = vmul.f32 %v644, 1.442695
    %v657 = vpow.pop %v656
    %v658 = vmul.f32 %v645, 1.442695
    %v659 = vpow.pop %v658
    %v660 = vmul.f32 %v646, 1.442695
    %v661 = vpow.pop %v660
    %v662 = vmul.f32 %v647, 1.442695
    %v663 = vpow.pop %v662
    %v664 = vsel %vm263, %v649, 0.0
    %665 = vadd.xlane.f32.xlu0 %v664
    %v666 = vpop.xlane.xlu0 %665
    %v667 = vsel %vm263, %v651, 0.0
    %668 = vadd.xlane.f32.xlu0 %v667
    %v669 = vpop.xlane.xlu0 %668
    %v670 = vsel %vm263, %v653, 0.0
    %671 = vadd.xlane.f32.xlu0 %v670
    %v672 = vpop.xlane.xlu0 %671
    %v673 = vsel %vm263, %v655, 0.0
    %674 = vadd.xlane.f32.xlu0 %v673
    %v675 = vpop.xlane.xlu0 %674
    %v676 = vsel %vm263, %v657, 0.0
    %677 = vadd.xlane.f32.xlu0 %v676
    %v678 = vpop.xlane.xlu0 %677
    %v679 = vsel %vm263, %v659, 0.0
    %680 = vadd.xlane.f32.xlu0 %v679
    %v681 = vpop.xlane.xlu0 %680
    %v682 = vsel %vm263, %v661, 0.0
    %683 = vadd.xlane.f32.xlu0 %v682
    %v684 = vpop.xlane.xlu0 %683
    %v685 = vsel %vm263, %v663, 0.0
    %686 = vadd.xlane.f32.xlu0 %v685
    %v687 = vpop.xlane.xlu0 %686
    %v688 = vpack.c.bf16 %v651, %v649
    %v689 = vpack.c.bf16 %v655, %v653
    %v690 = vpack.c.bf16 %v659, %v657
    %v691 = vpack.c.bf16 %v663, %v661
    %696 = vrot.lane.b32.xlu0 %v340, 112
    %v697 = vpop.permute.xlu0 %696
    %698 = vrot.lane.b32.xlu0 %v341, 112
    %v699 = vpop.permute.xlu0 %698
    %700 = vrot.lane.b32.xlu0 %v342, 112
    %v701 = vpop.permute.xlu0 %700
    %702 = vrot.lane.b32.xlu0 %v343, 112
    %v703 = vpop.permute.xlu0 %702
    %v709 = vsel %vm263, %v688, 0
    %v712 = vsel %vm263, %v689, 0
    %v715 = vsel %vm263, %v690, 0
    %v718 = vsel %vm263, %v691, 0
    %720 = vmatpush.bf16.msra.mxu0 0
    %721 = vmatpush.bf16.msra.mxu0 0
    %722 = vmatpush.bf16.msra.mxu0 0
    %723 = vmatpush.bf16.msra.mxu0 0
    %724 = vmatpush.bf16.msra.mxu0 %v703
    %725 = vmatpush.bf16.msra.mxu0 %v701
    %726 = vmatpush.bf16.msra.mxu0 %v699
    %727 = vmatpush.bf16.msra.mxu0 %v697
    %728 = vmatmul.bf16.gmra.mxu0 %v709
    %v729 = vpop.f32.mrf.mxu0
    %v730 = vadd.f32 0.0, %v729
    %v731 = vpop.f32.mrf.mxu0
    %v732 = vadd.f32 0.0, %v731
    %733 = vmatmul.bf16.gmra.mxu0 %v712
    %v734 = vpop.f32.mrf.mxu0
    %v735 = vadd.f32 0.0, %v734
    %v736 = vpop.f32.mrf.mxu0
    %v737 = vadd.f32 0.0, %v736
    %738 = vmatmul.bf16.gmra.mxu0 %v715
    %v739 = vpop.f32.mrf.mxu0
    %v740 = vadd.f32 0.0, %v739
    %v741 = vpop.f32.mrf.mxu0
    %v742 = vadd.f32 0.0, %v741
    %743 = vmatmul.bf16.gmra.mxu0 %v718
    %v744 = vpop.f32.mrf.mxu0
    %v745 = vadd.f32 0.0, %v744
    %v746 = vpop.f32.mrf.mxu0
    %v747 = vadd.f32 0.0, %v746
    %748 = vdwg.mxu0
    %v749 = vrcp.pop %v666
    %v750 = vrcp.pop %v669
    %v751 = vrcp.pop %v672
    %v752 = vrcp.pop %v675
    %v753 = vrcp.pop %v678
    %v754 = vrcp.pop %v681
    %v755 = vrcp.pop %v684
    %v756 = vrcp.pop %v687
    %v757 = vmul.f32 %v730, %v749
    %v758 = vmul.f32 %v732, %v750
    %v759 = vmul.f32 %v735, %v751
    %v760 = vmul.f32 %v737, %v752
    %v761 = vmul.f32 %v740, %v753
    %v762 = vmul.f32 %v742, %v754
    %v763 = vmul.f32 %v745, %v755
    %v764 = vmul.f32 %v747, %v756
    %vm765 = vcmp.gt.f32.partialorder %v757, 0.0
    %vm766 = vcmp.gt.f32.partialorder %v758, 0.0
    %vm767 = vcmp.gt.f32.partialorder %v759, 0.0
    %vm768 = vcmp.gt.f32.partialorder %v760, 0.0
    %vm769 = vcmp.gt.f32.partialorder %v761, 0.0
    %vm770 = vcmp.gt.f32.partialorder %v762, 0.0
    %vm771 = vcmp.gt.f32.partialorder %v763, 0.0
    %vm772 = vcmp.gt.f32.partialorder %v764, 0.0
    %v773 = vmin.f32 %v757, 0.0
    %v774 = vmin.f32 %v758, 0.0
    %v775 = vmin.f32 %v759, 0.0
    %v776 = vmin.f32 %v760, 0.0
    %v777 = vmin.f32 %v761, 0.0
    %v778 = vmin.f32 %v762, 0.0
    %v779 = vmin.f32 %v763, 0.0
    %v780 = vmin.f32 %v764, 0.0
    %v781 = vmul.f32 %v773, 1.442695
    %v782 = vpow.pop %v781
    %v783 = vmul.f32 %v774, 1.442695
    %v784 = vpow.pop %v783
    %v785 = vmul.f32 %v775, 1.442695
    %v786 = vpow.pop %v785
    %v787 = vmul.f32 %v776, 1.442695
    %v788 = vpow.pop %v787
    %v789 = vmul.f32 %v777, 1.442695
    %v790 = vpow.pop %v789
    %v791 = vmul.f32 %v778, 1.442695
    %v792 = vpow.pop %v791
    %v793 = vmul.f32 %v779, 1.442695
    %v794 = vpow.pop %v793
    %v795 = vmul.f32 %v780, 1.442695
    %v796 = vpow.pop %v795
    %v797 = vsub.f32 %v782, 1.0
    %v798 = vsub.f32 %v784, 1.0
    %v799 = vsub.f32 %v786, 1.0
    %v800 = vsub.f32 %v788, 1.0
    %v801 = vsub.f32 %v790, 1.0
    %v802 = vsub.f32 %v792, 1.0
    %v803 = vsub.f32 %v794, 1.0
    %v804 = vsub.f32 %v796, 1.0
    %v805 = vsel %vm765, %v757, %v797
    %v806 = vsel %vm766, %v758, %v798
    %v807 = vsel %vm767, %v759, %v799
    %v808 = vsel %vm768, %v760, %v800
    %v809 = vsel %vm769, %v761, %v801
    %v810 = vsel %vm770, %v762, %v802
    %v811 = vsel %vm771, %v763, %v803
    %v812 = vsel %vm772, %v764, %v804
    %v813 = vld [vmem:[%s3 + $0x2] sm:$0x1]
    %v814 = vld [vmem:[%s4 + $0x2] sm:$0x1]
    %v815 = vperm.slane %v813, 0
    %817 = vrot.lane.b32.xlu0 %v815, 32
    %v818 = vpop.permute.xlu0 %817
    %v820 = vmul.f32 %v123, %v818
    %v821 = vmul.f32 %v124, %v818
    %v822 = vmul.f32 %v125, %v818
    %v823 = vmul.f32 %v126, %v818
    %v824 = vmul.f32 %v127, %v818
    %v825 = vmul.f32 %v128, %v818
    %v826 = vmul.f32 %v129, %v818
    %v827 = vmul.f32 %v130, %v818
    %836 = vrot.lane.b32.xlu0 %v820, 96
    %v837 = vpop.permute.xlu0 %836
    %838 = vrot.lane.b32.xlu0 %v821, 96
    %v839 = vpop.permute.xlu0 %838
    %840 = vrot.lane.b32.xlu0 %v822, 96
    %v841 = vpop.permute.xlu0 %840
    %842 = vrot.lane.b32.xlu0 %v823, 96
    %v843 = vpop.permute.xlu0 %842
    %844 = vrot.lane.b32.xlu0 %v824, 96
    %v845 = vpop.permute.xlu0 %844
    %846 = vrot.lane.b32.xlu0 %v825, 96
    %v847 = vpop.permute.xlu0 %846
    %848 = vrot.lane.b32.xlu0 %v826, 96
    %v849 = vpop.permute.xlu0 %848
    %850 = vrot.lane.b32.xlu0 %v827, 96
    %v851 = vpop.permute.xlu0 %850
    %v860 = vsel %vm142, %v837, 0.0
    %861 = vadd.xlane.f32.xlu0 %v860
    %v862 = vpop.xlane.xlu0 %861
    %v863 = vsel %vm142, %v839, 0.0
    %864 = vadd.xlane.f32.xlu0 %v863
    %v865 = vpop.xlane.xlu0 %864
    %v866 = vsel %vm142, %v841, 0.0
    %867 = vadd.xlane.f32.xlu0 %v866
    %v868 = vpop.xlane.xlu0 %867
    %v869 = vsel %vm142, %v843, 0.0
    %870 = vadd.xlane.f32.xlu0 %v869
    %v871 = vpop.xlane.xlu0 %870
    %v872 = vsel %vm142, %v845, 0.0
    %873 = vadd.xlane.f32.xlu0 %v872
    %v874 = vpop.xlane.xlu0 %873
    %v875 = vsel %vm142, %v847, 0.0
    %876 = vadd.xlane.f32.xlu0 %v875
    %v877 = vpop.xlane.xlu0 %876
    %v878 = vsel %vm142, %v849, 0.0
    %879 = vadd.xlane.f32.xlu0 %v878
    %v880 = vpop.xlane.xlu0 %879
    %v881 = vsel %vm142, %v851, 0.0
    %882 = vadd.xlane.f32.xlu0 %v881
    %v883 = vpop.xlane.xlu0 %882
    %884 = vrot.lane.b32.xlu0 %v114, 96
    %v885 = vpop.permute.xlu0 %884
    %886 = vrot.lane.b32.xlu0 %v115, 96
    %v887 = vpop.permute.xlu0 %886
    %888 = vrot.lane.b32.xlu0 %v116, 96
    %v889 = vpop.permute.xlu0 %888
    %890 = vrot.lane.b32.xlu0 %v117, 96
    %v891 = vpop.permute.xlu0 %890
    %892 = vrot.lane.b32.xlu0 %v118, 96
    %v893 = vpop.permute.xlu0 %892
    %894 = vrot.lane.b32.xlu0 %v119, 96
    %v895 = vpop.permute.xlu0 %894
    %896 = vrot.lane.b32.xlu0 %v120, 96
    %v897 = vpop.permute.xlu0 %896
    %898 = vrot.lane.b32.xlu0 %v121, 96
    %v899 = vpop.permute.xlu0 %898
    %v901 = vsel %vm142, %v814, 0
    %v903 = vsel %vm142, %v885, 0
    %v905 = vsel %vm142, %v887, 0
    %v907 = vsel %vm142, %v889, 0
    %v909 = vsel %vm142, %v891, 0
    %v911 = vsel %vm142, %v893, 0
    %v913 = vsel %vm142, %v895, 0
    %v915 = vsel %vm142, %v897, 0
    %v917 = vsel %vm142, %v899, 0
    %919 = vmatpush.xpose.msra.mxu0 0.0
    %920 = vmatpush.xpose.msra.mxu0 0.0
    %921 = vmatpush.xpose.msra.mxu0 0.0
    %922 = vmatpush.xpose.msra.mxu0 0.0
    %923 = vmatpush.xpose.msra.mxu0 0.0
    %924 = vmatpush.xpose.msra.mxu0 0.0
    %925 = vmatpush.xpose.msra.mxu0 0.0
    %926 = vmatpush.xpose.msra.mxu0 0.0
    %927 = vmatpush.xpose.msra.mxu0 %v917
    %928 = vmatpush.xpose.msra.mxu0 %v915
    %929 = vmatpush.xpose.msra.mxu0 %v913
    %930 = vmatpush.xpose.msra.mxu0 %v911
    %931 = vmatpush.xpose.msra.mxu0 %v909
    %932 = vmatpush.xpose.msra.mxu0 %v907
    %933 = vmatpush.xpose.msra.mxu0 %v905
    %934 = vmatpush.xpose.msra.mxu0 %v903
    %935 = vmatmul.f32.gmra.mxu0 %v901
    %v936 = vpop.f32.mrf.mxu0
    %v937 = vadd.f32 0.0, %v936
    %938 = vdwg.mxu0
    %v939 = vperm.slane %v937, 0
    %v940 = vadd.f32 %v862, %v939
    %v941 = vadd.f32 %v865, %v939
    %v942 = vadd.f32 %v868, %v939
    %v943 = vadd.f32 %v871, %v939
    %v944 = vadd.f32 %v874, %v939
    %v945 = vadd.f32 %v877, %v939
    %v946 = vadd.f32 %v880, %v939
    %v947 = vadd.f32 %v883, %v939
    %vm948 = vcmp.gt.f32.partialorder %v940, 0.0
    %vm949 = vcmp.gt.f32.partialorder %v941, 0.0
    %vm950 = vcmp.gt.f32.partialorder %v942, 0.0
    %vm951 = vcmp.gt.f32.partialorder %v943, 0.0
    %vm952 = vcmp.gt.f32.partialorder %v944, 0.0
    %vm953 = vcmp.gt.f32.partialorder %v945, 0.0
    %vm954 = vcmp.gt.f32.partialorder %v946, 0.0
    %vm955 = vcmp.gt.f32.partialorder %v947, 0.0
    %v956 = vmul.f32 %v940, 0.2
    %v957 = vmul.f32 %v941, 0.2
    %v958 = vmul.f32 %v942, 0.2
    %v959 = vmul.f32 %v943, 0.2
    %v960 = vmul.f32 %v944, 0.2
    %v961 = vmul.f32 %v945, 0.2
    %v962 = vmul.f32 %v946, 0.2
    %v963 = vmul.f32 %v947, 0.2
    %v964 = vsel %vm948, %v940, %v956
    %v965 = vsel %vm949, %v941, %v957
    %v966 = vsel %vm950, %v942, %v958
    %v967 = vsel %vm951, %v943, %v959
    %v968 = vsel %vm952, %v944, %v960
    %v969 = vsel %vm953, %v945, %v961
    %v970 = vsel %vm954, %v946, %v962
    %v971 = vsel %vm955, %v947, %v963
    %v972 = vsel %vm247, %v964, -9e+15
    %v973 = vsel %vm248, %v965, -9e+15
    %v974 = vsel %vm249, %v966, -9e+15
    %v975 = vsel %vm250, %v967, -9e+15
    %v976 = vsel %vm251, %v968, -9e+15
    %v977 = vsel %vm252, %v969, -9e+15
    %v978 = vsel %vm253, %v970, -9e+15
    %v979 = vsel %vm254, %v971, -9e+15
    %v980 = vsel %vm263, %v972, -inf
    %981 = vmax.xlane.f32.xlu0 %v980
    %v982 = vpop.xlane.xlu0 %981
    %v983 = vsel %vm263, %v973, -inf
    %984 = vmax.xlane.f32.xlu0 %v983
    %v985 = vpop.xlane.xlu0 %984
    %v986 = vsel %vm263, %v974, -inf
    %987 = vmax.xlane.f32.xlu0 %v986
    %v988 = vpop.xlane.xlu0 %987
    %v989 = vsel %vm263, %v975, -inf
    %990 = vmax.xlane.f32.xlu0 %v989
    %v991 = vpop.xlane.xlu0 %990
    %v992 = vsel %vm263, %v976, -inf
    %993 = vmax.xlane.f32.xlu0 %v992
    %v994 = vpop.xlane.xlu0 %993
    %v995 = vsel %vm263, %v977, -inf
    %996 = vmax.xlane.f32.xlu0 %v995
    %v997 = vpop.xlane.xlu0 %996
    %v998 = vsel %vm263, %v978, -inf
    %999 = vmax.xlane.f32.xlu0 %v998
    %v1000 = vpop.xlane.xlu0 %999
    %v1001 = vsel %vm263, %v979, -inf
    %1002 = vmax.xlane.f32.xlu0 %v1001
    %v1003 = vpop.xlane.xlu0 %1002
    %v1004 = vsub.f32 %v972, %v982
    %v1005 = vsub.f32 %v973, %v985
    %v1006 = vsub.f32 %v974, %v988
    %v1007 = vsub.f32 %v975, %v991
    %v1008 = vsub.f32 %v976, %v994
    %v1009 = vsub.f32 %v977, %v997
    %v1010 = vsub.f32 %v978, %v1000
    %v1011 = vsub.f32 %v979, %v1003
    %v1012 = vmul.f32 %v1004, 1.442695
    %v1013 = vpow.pop %v1012
    %v1014 = vmul.f32 %v1005, 1.442695
    %v1015 = vpow.pop %v1014
    %v1016 = vmul.f32 %v1006, 1.442695
    %v1017 = vpow.pop %v1016
    %v1018 = vmul.f32 %v1007, 1.442695
    %v1019 = vpow.pop %v1018
    %v1020 = vmul.f32 %v1008, 1.442695
    %v1021 = vpow.pop %v1020
    %v1022 = vmul.f32 %v1009, 1.442695
    %v1023 = vpow.pop %v1022
    %v1024 = vmul.f32 %v1010, 1.442695
    %v1025 = vpow.pop %v1024
    %v1026 = vmul.f32 %v1011, 1.442695
    %v1027 = vpow.pop %v1026
    %v1028 = vsel %vm263, %v1013, 0.0
    %1029 = vadd.xlane.f32.xlu0 %v1028
    %v1030 = vpop.xlane.xlu0 %1029
    %v1031 = vsel %vm263, %v1015, 0.0
    %1032 = vadd.xlane.f32.xlu0 %v1031
    %v1033 = vpop.xlane.xlu0 %1032
    %v1034 = vsel %vm263, %v1017, 0.0
    %1035 = vadd.xlane.f32.xlu0 %v1034
    %v1036 = vpop.xlane.xlu0 %1035
    %v1037 = vsel %vm263, %v1019, 0.0
    %1038 = vadd.xlane.f32.xlu0 %v1037
    %v1039 = vpop.xlane.xlu0 %1038
    %v1040 = vsel %vm263, %v1021, 0.0
    %1041 = vadd.xlane.f32.xlu0 %v1040
    %v1042 = vpop.xlane.xlu0 %1041
    %v1043 = vsel %vm263, %v1023, 0.0
    %1044 = vadd.xlane.f32.xlu0 %v1043
    %v1045 = vpop.xlane.xlu0 %1044
    %v1046 = vsel %vm263, %v1025, 0.0
    %1047 = vadd.xlane.f32.xlu0 %v1046
    %v1048 = vpop.xlane.xlu0 %1047
    %v1049 = vsel %vm263, %v1027, 0.0
    %1050 = vadd.xlane.f32.xlu0 %v1049
    %v1051 = vpop.xlane.xlu0 %1050
    %v1052 = vpack.c.bf16 %v1015, %v1013
    %v1053 = vpack.c.bf16 %v1019, %v1017
    %v1054 = vpack.c.bf16 %v1023, %v1021
    %v1055 = vpack.c.bf16 %v1027, %v1025
    %1056 = vrot.lane.b32.xlu0 %v340, 96
    %v1057 = vpop.permute.xlu0 %1056
    %1058 = vrot.lane.b32.xlu0 %v341, 96
    %v1059 = vpop.permute.xlu0 %1058
    %1060 = vrot.lane.b32.xlu0 %v342, 96
    %v1061 = vpop.permute.xlu0 %1060
    %1062 = vrot.lane.b32.xlu0 %v343, 96
    %v1063 = vpop.permute.xlu0 %1062
    %v1069 = vsel %vm263, %v1052, 0
    %v1072 = vsel %vm263, %v1053, 0
    %v1075 = vsel %vm263, %v1054, 0
    %v1078 = vsel %vm263, %v1055, 0
    %1080 = vmatpush.bf16.msra.mxu0 0
    %1081 = vmatpush.bf16.msra.mxu0 0
    %1082 = vmatpush.bf16.msra.mxu0 0
    %1083 = vmatpush.bf16.msra.mxu0 0
    %1084 = vmatpush.bf16.msra.mxu0 %v1063
    %1085 = vmatpush.bf16.msra.mxu0 %v1061
    %1086 = vmatpush.bf16.msra.mxu0 %v1059
    %1087 = vmatpush.bf16.msra.mxu0 %v1057
    %1088 = vmatmul.bf16.gmra.mxu0 %v1069
    %v1089 = vpop.f32.mrf.mxu0
    %v1090 = vadd.f32 0.0, %v1089
    %v1091 = vpop.f32.mrf.mxu0
    %v1092 = vadd.f32 0.0, %v1091
    %1093 = vmatmul.bf16.gmra.mxu0 %v1072
    %v1094 = vpop.f32.mrf.mxu0
    %v1095 = vadd.f32 0.0, %v1094
    %v1096 = vpop.f32.mrf.mxu0
    %v1097 = vadd.f32 0.0, %v1096
    %1098 = vmatmul.bf16.gmra.mxu0 %v1075
    %v1099 = vpop.f32.mrf.mxu0
    %v1100 = vadd.f32 0.0, %v1099
    %v1101 = vpop.f32.mrf.mxu0
    %v1102 = vadd.f32 0.0, %v1101
    %1103 = vmatmul.bf16.gmra.mxu0 %v1078
    %v1104 = vpop.f32.mrf.mxu0
    %v1105 = vadd.f32 0.0, %v1104
    %v1106 = vpop.f32.mrf.mxu0
    %v1107 = vadd.f32 0.0, %v1106
    %1108 = vdwg.mxu0
    %v1109 = vrcp.pop %v1030
    %v1110 = vrcp.pop %v1033
    %v1111 = vrcp.pop %v1036
    %v1112 = vrcp.pop %v1039
    %v1113 = vrcp.pop %v1042
    %v1114 = vrcp.pop %v1045
    %v1115 = vrcp.pop %v1048
    %v1116 = vrcp.pop %v1051
    %v1117 = vmul.f32 %v1090, %v1109
    %v1118 = vmul.f32 %v1092, %v1110
    %v1119 = vmul.f32 %v1095, %v1111
    %v1120 = vmul.f32 %v1097, %v1112
    %v1121 = vmul.f32 %v1100, %v1113
    %v1122 = vmul.f32 %v1102, %v1114
    %v1123 = vmul.f32 %v1105, %v1115
    %v1124 = vmul.f32 %v1107, %v1116
    %vm1125 = vcmp.gt.f32.partialorder %v1117, 0.0
    %vm1126 = vcmp.gt.f32.partialorder %v1118, 0.0
    %vm1127 = vcmp.gt.f32.partialorder %v1119, 0.0
    %vm1128 = vcmp.gt.f32.partialorder %v1120, 0.0
    %vm1129 = vcmp.gt.f32.partialorder %v1121, 0.0
    %vm1130 = vcmp.gt.f32.partialorder %v1122, 0.0
    %vm1131 = vcmp.gt.f32.partialorder %v1123, 0.0
    %vm1132 = vcmp.gt.f32.partialorder %v1124, 0.0
    %v1133 = vmin.f32 %v1117, 0.0
    %v1134 = vmin.f32 %v1118, 0.0
    %v1135 = vmin.f32 %v1119, 0.0
    %v1136 = vmin.f32 %v1120, 0.0
    %v1137 = vmin.f32 %v1121, 0.0
    %v1138 = vmin.f32 %v1122, 0.0
    %v1139 = vmin.f32 %v1123, 0.0
    %v1140 = vmin.f32 %v1124, 0.0
    %v1141 = vmul.f32 %v1133, 1.442695
    %v1142 = vpow.pop %v1141
    %v1143 = vmul.f32 %v1134, 1.442695
    %v1144 = vpow.pop %v1143
    %v1145 = vmul.f32 %v1135, 1.442695
    %v1146 = vpow.pop %v1145
    %v1147 = vmul.f32 %v1136, 1.442695
    %v1148 = vpow.pop %v1147
    %v1149 = vmul.f32 %v1137, 1.442695
    %v1150 = vpow.pop %v1149
    %v1151 = vmul.f32 %v1138, 1.442695
    %v1152 = vpow.pop %v1151
    %v1153 = vmul.f32 %v1139, 1.442695
    %v1154 = vpow.pop %v1153
    %v1155 = vmul.f32 %v1140, 1.442695
    %v1156 = vpow.pop %v1155
    %v1157 = vsub.f32 %v1142, 1.0
    %v1158 = vsub.f32 %v1144, 1.0
    %v1159 = vsub.f32 %v1146, 1.0
    %v1160 = vsub.f32 %v1148, 1.0
    %v1161 = vsub.f32 %v1150, 1.0
    %v1162 = vsub.f32 %v1152, 1.0
    %v1163 = vsub.f32 %v1154, 1.0
    %v1164 = vsub.f32 %v1156, 1.0
    %v1165 = vsel %vm1125, %v1117, %v1157
    %v1166 = vsel %vm1126, %v1118, %v1158
    %v1167 = vsel %vm1127, %v1119, %v1159
    %v1168 = vsel %vm1128, %v1120, %v1160
    %v1169 = vsel %vm1129, %v1121, %v1161
    %v1170 = vsel %vm1130, %v1122, %v1162
    %v1171 = vsel %vm1131, %v1123, %v1163
    %v1172 = vsel %vm1132, %v1124, %v1164
    %v1173 = vld [vmem:[%s3 + $0x3] sm:$0x1]
    %v1174 = vld [vmem:[%s4 + $0x3] sm:$0x1]
    %v1175 = vperm.slane %v1173, 0
    %1177 = vrot.lane.b32.xlu0 %v1175, 48
    %v1178 = vpop.permute.xlu0 %1177
    %v1180 = vmul.f32 %v123, %v1178
    %v1181 = vmul.f32 %v124, %v1178
    %v1182 = vmul.f32 %v125, %v1178
    %v1183 = vmul.f32 %v126, %v1178
    %v1184 = vmul.f32 %v127, %v1178
    %v1185 = vmul.f32 %v128, %v1178
    %v1186 = vmul.f32 %v129, %v1178
    %v1187 = vmul.f32 %v130, %v1178
    %1196 = vrot.lane.b32.xlu0 %v1180, 80
    %v1197 = vpop.permute.xlu0 %1196
    %1198 = vrot.lane.b32.xlu0 %v1181, 80
    %v1199 = vpop.permute.xlu0 %1198
    %1200 = vrot.lane.b32.xlu0 %v1182, 80
    %v1201 = vpop.permute.xlu0 %1200
    %1202 = vrot.lane.b32.xlu0 %v1183, 80
    %v1203 = vpop.permute.xlu0 %1202
    %1204 = vrot.lane.b32.xlu0 %v1184, 80
    %v1205 = vpop.permute.xlu0 %1204
    %1206 = vrot.lane.b32.xlu0 %v1185, 80
    %v1207 = vpop.permute.xlu0 %1206
    %1208 = vrot.lane.b32.xlu0 %v1186, 80
    %v1209 = vpop.permute.xlu0 %1208
    %1210 = vrot.lane.b32.xlu0 %v1187, 80
    %v1211 = vpop.permute.xlu0 %1210
    %v1220 = vsel %vm142, %v1197, 0.0
    %1221 = vadd.xlane.f32.xlu0 %v1220
    %v1222 = vpop.xlane.xlu0 %1221
    %v1223 = vsel %vm142, %v1199, 0.0
    %1224 = vadd.xlane.f32.xlu0 %v1223
    %v1225 = vpop.xlane.xlu0 %1224
    %v1226 = vsel %vm142, %v1201, 0.0
    %1227 = vadd.xlane.f32.xlu0 %v1226
    %v1228 = vpop.xlane.xlu0 %1227
    %v1229 = vsel %vm142, %v1203, 0.0
    %1230 = vadd.xlane.f32.xlu0 %v1229
    %v1231 = vpop.xlane.xlu0 %1230
    %v1232 = vsel %vm142, %v1205, 0.0
    %1233 = vadd.xlane.f32.xlu0 %v1232
    %v1234 = vpop.xlane.xlu0 %1233
    %v1235 = vsel %vm142, %v1207, 0.0
    %1236 = vadd.xlane.f32.xlu0 %v1235
    %v1237 = vpop.xlane.xlu0 %1236
    %v1238 = vsel %vm142, %v1209, 0.0
    %1239 = vadd.xlane.f32.xlu0 %v1238
    %v1240 = vpop.xlane.xlu0 %1239
    %v1241 = vsel %vm142, %v1211, 0.0
    %1242 = vadd.xlane.f32.xlu0 %v1241
    %v1243 = vpop.xlane.xlu0 %1242
    %1244 = vrot.lane.b32.xlu0 %v114, 80
    %v1245 = vpop.permute.xlu0 %1244
    %1246 = vrot.lane.b32.xlu0 %v115, 80
    %v1247 = vpop.permute.xlu0 %1246
    %1248 = vrot.lane.b32.xlu0 %v116, 80
    %v1249 = vpop.permute.xlu0 %1248
    %1250 = vrot.lane.b32.xlu0 %v117, 80
    %v1251 = vpop.permute.xlu0 %1250
    %1252 = vrot.lane.b32.xlu0 %v118, 80
    %v1253 = vpop.permute.xlu0 %1252
    %1254 = vrot.lane.b32.xlu0 %v119, 80
    %v1255 = vpop.permute.xlu0 %1254
    %1256 = vrot.lane.b32.xlu0 %v120, 80
    %v1257 = vpop.permute.xlu0 %1256
    %1258 = vrot.lane.b32.xlu0 %v121, 80
    %v1259 = vpop.permute.xlu0 %1258
    %v1261 = vsel %vm142, %v1174, 0
    %v1263 = vsel %vm142, %v1245, 0
    %v1265 = vsel %vm142, %v1247, 0
    %v1267 = vsel %vm142, %v1249, 0
    %v1269 = vsel %vm142, %v1251, 0
    %v1271 = vsel %vm142, %v1253, 0
    %v1273 = vsel %vm142, %v1255, 0
    %v1275 = vsel %vm142, %v1257, 0
    %v1277 = vsel %vm142, %v1259, 0
    %1279 = vmatpush.xpose.msra.mxu0 0.0
    %1280 = vmatpush.xpose.msra.mxu0 0.0
    %1281 = vmatpush.xpose.msra.mxu0 0.0
    %1282 = vmatpush.xpose.msra.mxu0 0.0
    %1283 = vmatpush.xpose.msra.mxu0 0.0
    %1284 = vmatpush.xpose.msra.mxu0 0.0
    %1285 = vmatpush.xpose.msra.mxu0 0.0
    %1286 = vmatpush.xpose.msra.mxu0 0.0
    %1287 = vmatpush.xpose.msra.mxu0 %v1277
    %1288 = vmatpush.xpose.msra.mxu0 %v1275
    %1289 = vmatpush.xpose.msra.mxu0 %v1273
    %1290 = vmatpush.xpose.msra.mxu0 %v1271
    %1291 = vmatpush.xpose.msra.mxu0 %v1269
    %1292 = vmatpush.xpose.msra.mxu0 %v1267
    %1293 = vmatpush.xpose.msra.mxu0 %v1265
    %1294 = vmatpush.xpose.msra.mxu0 %v1263
    %1295 = vmatmul.f32.gmra.mxu0 %v1261
    %v1296 = vpop.f32.mrf.mxu0
    %v1297 = vadd.f32 0.0, %v1296
    %1298 = vdwg.mxu0
    %v1299 = vperm.slane %v1297, 0
    %v1300 = vadd.f32 %v1222, %v1299
    %v1301 = vadd.f32 %v1225, %v1299
    %v1302 = vadd.f32 %v1228, %v1299
    %v1303 = vadd.f32 %v1231, %v1299
    %v1304 = vadd.f32 %v1234, %v1299
    %v1305 = vadd.f32 %v1237, %v1299
    %v1306 = vadd.f32 %v1240, %v1299
    %v1307 = vadd.f32 %v1243, %v1299
    %vm1308 = vcmp.gt.f32.partialorder %v1300, 0.0
    %vm1309 = vcmp.gt.f32.partialorder %v1301, 0.0
    %vm1310 = vcmp.gt.f32.partialorder %v1302, 0.0
    %vm1311 = vcmp.gt.f32.partialorder %v1303, 0.0
    %vm1312 = vcmp.gt.f32.partialorder %v1304, 0.0
    %vm1313 = vcmp.gt.f32.partialorder %v1305, 0.0
    %vm1314 = vcmp.gt.f32.partialorder %v1306, 0.0
    %vm1315 = vcmp.gt.f32.partialorder %v1307, 0.0
    %v1316 = vmul.f32 %v1300, 0.2
    %v1317 = vmul.f32 %v1301, 0.2
    %v1318 = vmul.f32 %v1302, 0.2
    %v1319 = vmul.f32 %v1303, 0.2
    %v1320 = vmul.f32 %v1304, 0.2
    %v1321 = vmul.f32 %v1305, 0.2
    %v1322 = vmul.f32 %v1306, 0.2
    %v1323 = vmul.f32 %v1307, 0.2
    %v1324 = vsel %vm1308, %v1300, %v1316
    %v1325 = vsel %vm1309, %v1301, %v1317
    %v1326 = vsel %vm1310, %v1302, %v1318
    %v1327 = vsel %vm1311, %v1303, %v1319
    %v1328 = vsel %vm1312, %v1304, %v1320
    %v1329 = vsel %vm1313, %v1305, %v1321
    %v1330 = vsel %vm1314, %v1306, %v1322
    %v1331 = vsel %vm1315, %v1307, %v1323
    %v1332 = vsel %vm247, %v1324, -9e+15
    %v1333 = vsel %vm248, %v1325, -9e+15
    %v1334 = vsel %vm249, %v1326, -9e+15
    %v1335 = vsel %vm250, %v1327, -9e+15
    %v1336 = vsel %vm251, %v1328, -9e+15
    %v1337 = vsel %vm252, %v1329, -9e+15
    %v1338 = vsel %vm253, %v1330, -9e+15
    %v1339 = vsel %vm254, %v1331, -9e+15
    %v1340 = vsel %vm263, %v1332, -inf
    %1341 = vmax.xlane.f32.xlu0 %v1340
    %v1342 = vpop.xlane.xlu0 %1341
    %v1343 = vsel %vm263, %v1333, -inf
    %1344 = vmax.xlane.f32.xlu0 %v1343
    %v1345 = vpop.xlane.xlu0 %1344
    %v1346 = vsel %vm263, %v1334, -inf
    %1347 = vmax.xlane.f32.xlu0 %v1346
    %v1348 = vpop.xlane.xlu0 %1347
    %v1349 = vsel %vm263, %v1335, -inf
    %1350 = vmax.xlane.f32.xlu0 %v1349
    %v1351 = vpop.xlane.xlu0 %1350
    %v1352 = vsel %vm263, %v1336, -inf
    %1353 = vmax.xlane.f32.xlu0 %v1352
    %v1354 = vpop.xlane.xlu0 %1353
    %v1355 = vsel %vm263, %v1337, -inf
    %1356 = vmax.xlane.f32.xlu0 %v1355
    %v1357 = vpop.xlane.xlu0 %1356
    %v1358 = vsel %vm263, %v1338, -inf
    %1359 = vmax.xlane.f32.xlu0 %v1358
    %v1360 = vpop.xlane.xlu0 %1359
    %v1361 = vsel %vm263, %v1339, -inf
    %1362 = vmax.xlane.f32.xlu0 %v1361
    %v1363 = vpop.xlane.xlu0 %1362
    %v1364 = vsub.f32 %v1332, %v1342
    %v1365 = vsub.f32 %v1333, %v1345
    %v1366 = vsub.f32 %v1334, %v1348
    %v1367 = vsub.f32 %v1335, %v1351
    %v1368 = vsub.f32 %v1336, %v1354
    %v1369 = vsub.f32 %v1337, %v1357
    %v1370 = vsub.f32 %v1338, %v1360
    %v1371 = vsub.f32 %v1339, %v1363
    %v1372 = vmul.f32 %v1364, 1.442695
    %v1373 = vpow.pop %v1372
    %v1374 = vmul.f32 %v1365, 1.442695
    %v1375 = vpow.pop %v1374
    %v1376 = vmul.f32 %v1366, 1.442695
    %v1377 = vpow.pop %v1376
    %v1378 = vmul.f32 %v1367, 1.442695
    %v1379 = vpow.pop %v1378
    %v1380 = vmul.f32 %v1368, 1.442695
    %v1381 = vpow.pop %v1380
    %v1382 = vmul.f32 %v1369, 1.442695
    %v1383 = vpow.pop %v1382
    %v1384 = vmul.f32 %v1370, 1.442695
    %v1385 = vpow.pop %v1384
    %v1386 = vmul.f32 %v1371, 1.442695
    %v1387 = vpow.pop %v1386
    %v1388 = vsel %vm263, %v1373, 0.0
    %1389 = vadd.xlane.f32.xlu0 %v1388
    %v1390 = vpop.xlane.xlu0 %1389
    %v1391 = vsel %vm263, %v1375, 0.0
    %1392 = vadd.xlane.f32.xlu0 %v1391
    %v1393 = vpop.xlane.xlu0 %1392
    %v1394 = vsel %vm263, %v1377, 0.0
    %1395 = vadd.xlane.f32.xlu0 %v1394
    %v1396 = vpop.xlane.xlu0 %1395
    %v1397 = vsel %vm263, %v1379, 0.0
    %1398 = vadd.xlane.f32.xlu0 %v1397
    %v1399 = vpop.xlane.xlu0 %1398
    %v1400 = vsel %vm263, %v1381, 0.0
    %1401 = vadd.xlane.f32.xlu0 %v1400
    %v1402 = vpop.xlane.xlu0 %1401
    %v1403 = vsel %vm263, %v1383, 0.0
    %1404 = vadd.xlane.f32.xlu0 %v1403
    %v1405 = vpop.xlane.xlu0 %1404
    %v1406 = vsel %vm263, %v1385, 0.0
    %1407 = vadd.xlane.f32.xlu0 %v1406
    %v1408 = vpop.xlane.xlu0 %1407
    %v1409 = vsel %vm263, %v1387, 0.0
    %1410 = vadd.xlane.f32.xlu0 %v1409
    %v1411 = vpop.xlane.xlu0 %1410
    %v1412 = vpack.c.bf16 %v1375, %v1373
    %v1413 = vpack.c.bf16 %v1379, %v1377
    %v1414 = vpack.c.bf16 %v1383, %v1381
    %v1415 = vpack.c.bf16 %v1387, %v1385
    %1416 = vrot.lane.b32.xlu0 %v340, 80
    %v1417 = vpop.permute.xlu0 %1416
    %1418 = vrot.lane.b32.xlu0 %v341, 80
    %v1419 = vpop.permute.xlu0 %1418
    %1420 = vrot.lane.b32.xlu0 %v342, 80
    %v1421 = vpop.permute.xlu0 %1420
    %1422 = vrot.lane.b32.xlu0 %v343, 80
    %v1423 = vpop.permute.xlu0 %1422
    %v1429 = vsel %vm263, %v1412, 0
    %v1432 = vsel %vm263, %v1413, 0
    %v1435 = vsel %vm263, %v1414, 0
    %v1438 = vsel %vm263, %v1415, 0
    %1440 = vmatpush.bf16.msra.mxu0 0
    %1441 = vmatpush.bf16.msra.mxu0 0
    %1442 = vmatpush.bf16.msra.mxu0 0
    %1443 = vmatpush.bf16.msra.mxu0 0
    %1444 = vmatpush.bf16.msra.mxu0 %v1423
    %1445 = vmatpush.bf16.msra.mxu0 %v1421
    %1446 = vmatpush.bf16.msra.mxu0 %v1419
    %1447 = vmatpush.bf16.msra.mxu0 %v1417
    %1448 = vmatmul.bf16.gmra.mxu0 %v1429
    %v1449 = vpop.f32.mrf.mxu0
    %v1450 = vadd.f32 0.0, %v1449
    %v1451 = vpop.f32.mrf.mxu0
    %v1452 = vadd.f32 0.0, %v1451
    %1453 = vmatmul.bf16.gmra.mxu0 %v1432
    %v1454 = vpop.f32.mrf.mxu0
    %v1455 = vadd.f32 0.0, %v1454
    %v1456 = vpop.f32.mrf.mxu0
    %v1457 = vadd.f32 0.0, %v1456
    %1458 = vmatmul.bf16.gmra.mxu0 %v1435
    %v1459 = vpop.f32.mrf.mxu0
    %v1460 = vadd.f32 0.0, %v1459
    %v1461 = vpop.f32.mrf.mxu0
    %v1462 = vadd.f32 0.0, %v1461
    %1463 = vmatmul.bf16.gmra.mxu0 %v1438
    %v1464 = vpop.f32.mrf.mxu0
    %v1465 = vadd.f32 0.0, %v1464
    %v1466 = vpop.f32.mrf.mxu0
    %v1467 = vadd.f32 0.0, %v1466
    %1468 = vdwg.mxu0
    %v1469 = vrcp.pop %v1390
    %v1470 = vrcp.pop %v1393
    %v1471 = vrcp.pop %v1396
    %v1472 = vrcp.pop %v1399
    %v1473 = vrcp.pop %v1402
    %v1474 = vrcp.pop %v1405
    %v1475 = vrcp.pop %v1408
    %v1476 = vrcp.pop %v1411
    %v1477 = vmul.f32 %v1450, %v1469
    %v1478 = vmul.f32 %v1452, %v1470
    %v1479 = vmul.f32 %v1455, %v1471
    %v1480 = vmul.f32 %v1457, %v1472
    %v1481 = vmul.f32 %v1460, %v1473
    %v1482 = vmul.f32 %v1462, %v1474
    %v1483 = vmul.f32 %v1465, %v1475
    %v1484 = vmul.f32 %v1467, %v1476
    %vm1485 = vcmp.gt.f32.partialorder %v1477, 0.0
    %vm1486 = vcmp.gt.f32.partialorder %v1478, 0.0
    %vm1487 = vcmp.gt.f32.partialorder %v1479, 0.0
    %vm1488 = vcmp.gt.f32.partialorder %v1480, 0.0
    %vm1489 = vcmp.gt.f32.partialorder %v1481, 0.0
    %vm1490 = vcmp.gt.f32.partialorder %v1482, 0.0
    %vm1491 = vcmp.gt.f32.partialorder %v1483, 0.0
    %vm1492 = vcmp.gt.f32.partialorder %v1484, 0.0
    %v1493 = vmin.f32 %v1477, 0.0
    %v1494 = vmin.f32 %v1478, 0.0
    %v1495 = vmin.f32 %v1479, 0.0
    %v1496 = vmin.f32 %v1480, 0.0
    %v1497 = vmin.f32 %v1481, 0.0
    %v1498 = vmin.f32 %v1482, 0.0
    %v1499 = vmin.f32 %v1483, 0.0
    %v1500 = vmin.f32 %v1484, 0.0
    %v1501 = vmul.f32 %v1493, 1.442695
    %v1502 = vpow.pop %v1501
    %v1503 = vmul.f32 %v1494, 1.442695
    %v1504 = vpow.pop %v1503
    %v1505 = vmul.f32 %v1495, 1.442695
    %v1506 = vpow.pop %v1505
    %v1507 = vmul.f32 %v1496, 1.442695
    %v1508 = vpow.pop %v1507
    %v1509 = vmul.f32 %v1497, 1.442695
    %v1510 = vpow.pop %v1509
    %v1511 = vmul.f32 %v1498, 1.442695
    %v1512 = vpow.pop %v1511
    %v1513 = vmul.f32 %v1499, 1.442695
    %v1514 = vpow.pop %v1513
    %v1515 = vmul.f32 %v1500, 1.442695
    %v1516 = vpow.pop %v1515
    %v1517 = vsub.f32 %v1502, 1.0
    %v1518 = vsub.f32 %v1504, 1.0
    %v1519 = vsub.f32 %v1506, 1.0
    %v1520 = vsub.f32 %v1508, 1.0
    %v1521 = vsub.f32 %v1510, 1.0
    %v1522 = vsub.f32 %v1512, 1.0
    %v1523 = vsub.f32 %v1514, 1.0
    %v1524 = vsub.f32 %v1516, 1.0
    %v1525 = vsel %vm1485, %v1477, %v1517
    %v1526 = vsel %vm1486, %v1478, %v1518
    %v1527 = vsel %vm1487, %v1479, %v1519
    %v1528 = vsel %vm1488, %v1480, %v1520
    %v1529 = vsel %vm1489, %v1481, %v1521
    %v1530 = vsel %vm1490, %v1482, %v1522
    %v1531 = vsel %vm1491, %v1483, %v1523
    %v1532 = vsel %vm1492, %v1484, %v1524
    %1541 = vrot.lane.b32.xlu0 %v805, 16
    %v1542 = vpop.permute.xlu0 %1541
    %1543 = vrot.lane.b32.xlu0 %v806, 16
    %v1544 = vpop.permute.xlu0 %1543
    %1545 = vrot.lane.b32.xlu0 %v807, 16
    %v1546 = vpop.permute.xlu0 %1545
    %1547 = vrot.lane.b32.xlu0 %v808, 16
    %v1548 = vpop.permute.xlu0 %1547
    %1549 = vrot.lane.b32.xlu0 %v809, 16
    %v1550 = vpop.permute.xlu0 %1549
    %1551 = vrot.lane.b32.xlu0 %v810, 16
    %v1552 = vpop.permute.xlu0 %1551
    %1553 = vrot.lane.b32.xlu0 %v811, 16
    %v1554 = vpop.permute.xlu0 %1553
    %1555 = vrot.lane.b32.xlu0 %v812, 16
    %v1556 = vpop.permute.xlu0 %1555
    %1573 = vrot.lane.b32.xlu0 %v1165, 32
    %v1574 = vpop.permute.xlu0 %1573
    %1575 = vrot.lane.b32.xlu0 %v1166, 32
    %v1576 = vpop.permute.xlu0 %1575
    %1577 = vrot.lane.b32.xlu0 %v1167, 32
    %v1578 = vpop.permute.xlu0 %1577
    %1579 = vrot.lane.b32.xlu0 %v1168, 32
    %v1580 = vpop.permute.xlu0 %1579
    %1581 = vrot.lane.b32.xlu0 %v1169, 32
    %v1582 = vpop.permute.xlu0 %1581
    %1583 = vrot.lane.b32.xlu0 %v1170, 32
    %v1584 = vpop.permute.xlu0 %1583
    %1585 = vrot.lane.b32.xlu0 %v1171, 32
    %v1586 = vpop.permute.xlu0 %1585
    %1587 = vrot.lane.b32.xlu0 %v1172, 32
    %v1588 = vpop.permute.xlu0 %1587
    %1605 = vrot.lane.b32.xlu0 %v1525, 48
    %v1606 = vpop.permute.xlu0 %1605
    %1607 = vrot.lane.b32.xlu0 %v1526, 48
    %v1608 = vpop.permute.xlu0 %1607
    %1609 = vrot.lane.b32.xlu0 %v1527, 48
    %v1610 = vpop.permute.xlu0 %1609
    %1611 = vrot.lane.b32.xlu0 %v1528, 48
    %v1612 = vpop.permute.xlu0 %1611
    %1613 = vrot.lane.b32.xlu0 %v1529, 48
    %v1614 = vpop.permute.xlu0 %1613
    %1615 = vrot.lane.b32.xlu0 %v1530, 48
    %v1616 = vpop.permute.xlu0 %1615
    %1617 = vrot.lane.b32.xlu0 %v1531, 48
    %v1618 = vpop.permute.xlu0 %1617
    %1619 = vrot.lane.b32.xlu0 %v1532, 48
    %v1620 = vpop.permute.xlu0 %1619
    %v1629 = vsel %vm142, %v441, %v1542
    %v1630 = vsel %vm142, %v442, %v1544
    %v1631 = vsel %vm142, %v443, %v1546
    %v1632 = vsel %vm142, %v444, %v1548
    %v1633 = vsel %vm142, %v445, %v1550
    %v1634 = vsel %vm142, %v446, %v1552
    %v1635 = vsel %vm142, %v447, %v1554
    %v1636 = vsel %vm142, %v448, %v1556
    %vm1637 = vcmask 261120
    %v1638 = vsel %vm1637, %v1629, %v1574
    %v1639 = vsel %vm1637, %v1630, %v1576
    %v1640 = vsel %vm1637, %v1631, %v1578
    %v1641 = vsel %vm1637, %v1632, %v1580
    %v1642 = vsel %vm1637, %v1633, %v1582
    %v1643 = vsel %vm1637, %v1634, %v1584
    %v1644 = vsel %vm1637, %v1635, %v1586
    %v1645 = vsel %vm1637, %v1636, %v1588
    %vm1646 = vcmask 392192
    %v1647 = vsel %vm1646, %v1638, %v1606
    %v1648 = vsel %vm1646, %v1639, %v1608
    %v1649 = vsel %vm1646, %v1640, %v1610
    %v1650 = vsel %vm1646, %v1641, %v1612
    %v1651 = vsel %vm1646, %v1642, %v1614
    %v1652 = vsel %vm1646, %v1643, %v1616
    %v1653 = vsel %vm1646, %v1644, %v1618
    %v1654 = vsel %vm1646, %v1645, %v1620
    %1655 = vst.msk [vmem:[#allocation3] sm:$0xff] %vm263, %v1647
    %1656 = vst.msk [vmem:[#allocation3 + $0x8] sm:$0xff] %vm263, %v1648
    %1657 = vst.msk [vmem:[#allocation3 + $0x10] sm:$0xff] %vm263, %v1649
    %1658 = vst.msk [vmem:[#allocation3 + $0x18] sm:$0xff] %vm263, %v1650
    %1659 = vst.msk [vmem:[#allocation3 + $0x20] sm:$0xff] %vm263, %v1651
    %1660 = vst.msk [vmem:[#allocation3 + $0x28] sm:$0xff] %vm263, %v1652
    %1661 = vst.msk [vmem:[#allocation3 + $0x30] sm:$0xff] %vm263, %v1653
    %1662 = vst.msk [vmem:[#allocation3 + $0x38] sm:$0xff] %vm263, %v1654
    // Predicated region
    $region26: #{tpu_custom_call.1} parent=1 // pred_check
      _
    $region27: #{tpu_custom_call.1} parent=1 // pred_check_branch
      %1664 = sbr.rel (0) target = $region29
    $region28: #{tpu_custom_call.1} parent=1 // pred_region
      %1666 = vsyncadd [#allocation4], 0
      %s1667 = sshll.u32 [#allocation3], 4
      %s1668 = int_to_ptr.vmem [resolvable:$true] %s1667
      %s1669 = sshll.u32 %s5, 4
      %s1670 = int_to_ptr.hbm [resolvable:$true] %s1669
      %1675 = dma.vmem_to_hbm [thread:$0]  %s1668, 1024, %s1670, [#allocation4], 128, 128, 8
    $region29: #{tpu_custom_call.1} parent=1 // pred_fallthru
      _
    // Predicated region
    $region30: #{tpu_custom_call.1} parent=1 // pred_check
      _
    $region31: #{tpu_custom_call.1} parent=1 // pred_check_branch
      %1677 = sbr.rel (0) target = $region33
    $region32: #{tpu_custom_call.1} parent=1 // pred_region
      %1679 = dma.done [#allocation4], 1024
    $region33: #{tpu_custom_call.1} parent=1 // pred_fallthru
      _
    %1680 = vsyncpa [#allocation4], 1

</llo_original>
